<compile_context>
chip_gen: v7x
topology: tpu7x:2x2x1
jax: 0.10.0
libtpu: 0.0.40
codegen_flags: <defaults>
</compile_context>

<pallas_src>
import jax
import jax.numpy as jnp
from jax import lax
from jax.experimental import pallas as pl
from jax.experimental.pallas import tpu as pltpu

# ---------------- small CLIP-ViT config ----------------
IMAGE_SIZE = 16
PATCH_SIZE = 8
NUM_CHANNELS = 3
HIDDEN = 32
NUM_HEADS = 4
HEAD_DIM = HIDDEN // NUM_HEADS
INTERMEDIATE = 64
NUM_LAYERS = 2
NUM_PATCHES = (IMAGE_SIZE // PATCH_SIZE) ** 2
SEQ = NUM_PATCHES + 1                      # +1 class token
CPP = NUM_CHANNELS * PATCH_SIZE * PATCH_SIZE
LN_EPS = 1e-5


def _layernorm(x, g, b):
    mu = jnp.mean(x, axis=-1, keepdims=True)
    var = jnp.mean(jnp.square(x - mu), axis=-1, keepdims=True)
    return (x - mu) * lax.rsqrt(var + LN_EPS) * g + b


# ---------------- fused kernel (one grid step = one image x one layer) ----------------
def clip_vision_kernel(xp_ref, pw_ref, emb_ref, oln_ref,          # embeddings / outer LN
                       lln_ref, wqkv_ref, bqkv_ref, wo_ref, bo_ref,  # per-layer attn
                       w1_ref, b1_ref, w2_ref, b2_ref,             # per-layer MLP
                       o_ref,                                      # (1, D) pooled out
                       x_scr):                                     # (S, D) resident state
    layer = pl.program_id(1)
    n_layers = pl.num_programs(1)
    D = HIDDEN
    Dh = HEAD_DIM
    scale = Dh ** -0.5
    bf16 = jnp.bfloat16
    f32 = jnp.float32

    oln = oln_ref[...]                                   # (4, D): pre g/b, post g/b

    # ---- layer 0 only: patch-embed matmul, cls/pos add, pre-layernorm ----
    @pl.when(layer == 0)
    def _():
        # xp row 0 is all-zero (cls slot inserted in wrapper) -> pe row 0 == 0;
        # emb row 0 == cls + pos[0], rows 1.. == pos[1:]  => no in-kernel concatenate.
        pe = jnp.dot(xp_ref[...], pw_ref[...], preferred_element_type=f32)   # (S, D)
        x0 = pe + emb_ref[...]
        x_scr[...] = _layernorm(x0, oln[0], oln[1])

    x = x_scr[...]                                       # (S, D) f32
    lln = lln_ref[...]                                   # (4, D)

    # ---- self-attention (pre-LN) ----
    h = _layernorm(x, lln[0], lln[1]).astype(bf16)       # (S, D)
    q = jnp.dot(h, wqkv_ref[0], preferred_element_type=f32) + bqkv_ref[0]
    k = jnp.dot(h, wqkv_ref[1], preferred_element_type=f32) + bqkv_ref[1]
    v = jnp.dot(h, wqkv_ref[2], preferred_element_type=f32) + bqkv_ref[2]
    qb, kb, vb = q.astype(bf16), k.astype(bf16), v.astype(bf16)

    head_ctx = []
    for hd in range(NUM_HEADS):                          # static, tiny (S=5, Dh=8)
        sl = slice(hd * Dh, (hd + 1) * Dh)
        s = lax.dot_general(qb[:, sl], kb[:, sl], (((1,), (1,)), ((), ())),
                            preferred_element_type=f32) * scale        # (S, S)
        s = s - jnp.max(s, axis=-1, keepdims=True)
        p = jnp.exp(s)
        p = p * pl.reciprocal(jnp.sum(p, axis=-1, keepdims=True), approx=True)
        head_ctx.append(jnp.dot(p.astype(bf16), vb[:, sl],
                                preferred_element_type=f32))           # (S, Dh)
    ctx = jnp.concatenate(head_ctx, axis=-1)             # (S, D)
    attn = jnp.dot(ctx.astype(bf16), wo_ref[...],
                   preferred_element_type=f32) + bo_ref[...]
    x = x + attn

    # ---- MLP (QuickGELU, as in CLIP) ----
    h2 = _layernorm(x, lln[2], lln[3]).astype(bf16)
    f = jnp.dot(h2, w1_ref[...], preferred_element_type=f32) + b1_ref[...]
    f = f * jax.nn.sigmoid(1.702 * f)                    # quick_gelu (f32)
    f = jnp.dot(f.astype(bf16), w2_ref[...], preferred_element_type=f32) + b2_ref[...]
    x = x + f

    x_scr[...] = x                                       # carried to next layer

    # ---- last layer: pooler_output = post_layernorm(hidden[:, 0, :]) ----
    @pl.when(layer == n_layers - 1)
    def _():
        o_ref[0] = _layernorm(x[0:1, :], oln[2], oln[3])


# ---------------- parameters (per-layer weights stacked on a leading L axis) ----------------
def init_params(key):
    def normal(k, shape, scale=0.02):
        return scale * jax.random.normal(k, shape, jnp.float32)

    keys = iter(jax.random.split(key, 16))
    ln_layer = jnp.stack([jnp.ones(HIDDEN), jnp.zeros(HIDDEN),
                          jnp.ones(HIDDEN), jnp.zeros(HIDDEN)]).astype(jnp.float32)
    return {
        # Conv2d(kernel=stride=P, bias=False) weight flattened to (C*P*P, D)
        "patch_w": normal(next(keys), (CPP, HIDDEN)),
        "cls": normal(next(keys), (HIDDEN,)),
        "pos": normal(next(keys), (SEQ, HIDDEN)),
        "pre_ln_g": jnp.ones((HIDDEN,), jnp.float32),
        "pre_ln_b": jnp.zeros((HIDDEN,), jnp.float32),
        "post_ln_g": jnp.ones((HIDDEN,), jnp.float32),
        "post_ln_b": jnp.zeros((HIDDEN,), jnp.float32),
        "ln_w": jnp.stack([ln_layer] * NUM_LAYERS),                      # (L, 4, D)
        "wqkv": normal(next(keys), (NUM_LAYERS, 3, HIDDEN, HIDDEN)),     # (L, 3, D, D)
        "bqkv": normal(next(keys), (NUM_LAYERS, 3, 1, HIDDEN)),
        "wo": normal(next(keys), (NUM_LAYERS, HIDDEN, HIDDEN)),
        "bo": normal(next(keys), (NUM_LAYERS, 1, HIDDEN)),
        "w1": normal(next(keys), (NUM_LAYERS, HIDDEN, INTERMEDIATE)),
        "b1": normal(next(keys), (NUM_LAYERS, 1, INTERMEDIATE)),
        "w2": normal(next(keys), (NUM_LAYERS, INTERMEDIATE, HIDDEN)),
        "b2": normal(next(keys), (NUM_LAYERS, 1, HIDDEN)),
    }


# ---------------- forward (pooler_output) ----------------
def clip_vision_forward(pixel_values, params):
    B = pixel_values.shape[0]
    hp = IMAGE_SIZE // PATCH_SIZE
    D, I, S, L = HIDDEN, INTERMEDIATE, SEQ, NUM_LAYERS
    bf = jnp.bfloat16

    # im2col layout glue (plain JAX): NCHW -> (B, Np, C*P*P) matching Conv2d(k=s=P, no bias),
    # then prepend an all-zero cls-slot row per image -> (B, S, C*P*P).
    xp = pixel_values.reshape(B, NUM_CHANNELS, hp, PATCH_SIZE, hp, PATCH_SIZE)
    xp = xp.transpose(0, 2, 4, 1, 3, 5).reshape(B, NUM_PATCHES, CPP)
    xp = jnp.concatenate([jnp.zeros((B, 1, CPP), xp.dtype), xp], axis=1)
    xp = xp.astype(bf)

    # row 0 = cls + pos[0]; rows 1.. = patch position embeddings
    emb = jnp.concatenate(
        [params["cls"][None, :] + params["pos"][0:1], params["pos"][1:]], axis=0)
    outer_ln = jnp.stack(
        [params["pre_ln_g"], params["pre_ln_b"],
         params["post_ln_g"], params["post_ln_b"]], axis=0)              # (4, D)

    # Pre-cast matmul weights to bf16 in the wrapper (halves weight DMA + VMEM residency).
    pw = params["patch_w"].astype(bf)
    wqkv = params["wqkv"].astype(bf)
    wo = params["wo"].astype(bf)
    w1 = params["w1"].astype(bf)
    w2 = params["w2"].astype(bf)

    out = pl.pallas_call(
        clip_vision_kernel,
        out_shape=jax.ShapeDtypeStruct((B, 1, D), jnp.float32),
        grid_spec=pltpu.PrefetchScalarGridSpec(
            num_scalar_prefetch=0,
            grid=(B, L),                                  # batch (parallel) x layer (arbitrary)
            in_specs=[
                pl.BlockSpec((None, S, CPP), lambda b, l: (b, 0, 0)),     # xp (per image)
                pl.BlockSpec((CPP, D), lambda b, l: (0, 0)),              # patch_w
                pl.BlockSpec((S, D), lambda b, l: (0, 0)),                # emb
                pl.BlockSpec((4, D), lambda b, l: (0, 0)),                # pre/post LN
                pl.BlockSpec((None, 4, D), lambda b, l: (l, 0, 0)),       # per-layer LN
                pl.BlockSpec((None, 3, D, D), lambda b, l: (l, 0, 0, 0)), # wqkv
                pl.BlockSpec((None, 3, 1, D), lambda b, l: (l, 0, 0, 0)), # bqkv
                pl.BlockSpec((None, D, D), lambda b, l: (l, 0, 0)),       # wo
                pl.BlockSpec((None, 1, D), lambda b, l: (l, 0, 0)),       # bo
                pl.BlockSpec((None, D, I), lambda b, l: (l, 0, 0)),       # w1
                pl.BlockSpec((None, 1, I), lambda b, l: (l, 0, 0)),       # b1
                pl.BlockSpec((None, I, D), lambda b, l: (l, 0, 0)),       # w2
                pl.BlockSpec((None, 1, D), lambda b, l: (l, 0, 0)),       # b2
            ],
            out_specs=pl.BlockSpec((1, 1, D), lambda b, l: (b, 0, 0)),
            scratch_shapes=[pltpu.VMEM((S, D), jnp.float32)],             # resident hidden state
        ),
        compiler_params=pltpu.CompilerParams(
            dimension_semantics=("parallel", "arbitrary"),
            vmem_limit_bytes=32 * 1024 * 1024),
    )(xp, pw, emb, outer_ln, params["ln_w"], wqkv, params["bqkv"],
      wo, params["bo"], w1, params["b1"], w2, params["b2"])

    # TODO(synk): (B, 32) pooled output is lane-sparse; pad to a 128-multiple last dim or
    # keep it in VMEM for a fused downstream consumer at real CLIP sizes.
    return out.reshape(B, D)


if __name__ == "__main__":
    key = jax.random.PRNGKey(0)
    k_params, k_pix = jax.random.split(key)
    params = init_params(k_params)
    pixel_values = jax.random.normal(
        k_pix, (2, NUM_CHANNELS, IMAGE_SIZE, IMAGE_SIZE), jnp.float32)

    fwd = jax.jit(clip_vision_forward)
    pooler_output = jax.block_until_ready(fwd(pixel_values, params))

    assert pooler_output.shape == (2, HIDDEN)
    assert bool(jnp.all(jnp.isfinite(pooler_output)))
    print("KERNEL_OK")
</pallas_src>

<mosaic_0001>
module attributes {stable_mosaic.version = 11 : i64} {
  func.func @clip_vision_kernel(%arg0: i32, %arg1: i32, %arg2: memref<1x5x192xbf16, #tpu.memory_space<vmem>>, %arg3: memref<192x32xbf16, #tpu.memory_space<vmem>>, %arg4: memref<5x32xf32, #tpu.memory_space<vmem>>, %arg5: memref<4x32xf32, #tpu.memory_space<vmem>>, %arg6: memref<1x4x32xf32, #tpu.memory_space<vmem>>, %arg7: memref<1x3x32x32xbf16, #tpu.memory_space<vmem>>, %arg8: memref<1x3x1x32xf32, #tpu.memory_space<vmem>>, %arg9: memref<1x32x32xbf16, #tpu.memory_space<vmem>>, %arg10: memref<1x1x32xf32, #tpu.memory_space<vmem>>, %arg11: memref<1x32x64xbf16, #tpu.memory_space<vmem>>, %arg12: memref<1x1x64xf32, #tpu.memory_space<vmem>>, %arg13: memref<1x64x32xbf16, #tpu.memory_space<vmem>>, %arg14: memref<1x1x32xf32, #tpu.memory_space<vmem>>, %arg15: memref<1x1x32xf32, #tpu.memory_space<vmem>>, %arg16: memref<5x32xf32, #tpu.memory_space<vmem>>) attributes {dimension_semantics = [#tpu.dimension_semantics<parallel>, #tpu.dimension_semantics<arbitrary>], iteration_bounds = array<i64: 2, 2>, scalar_prefetch = 0 : i64, scratch_operands = 1 : i64, tpu.core_type = #tpu.core_type<tc>, window_params = [{transform_indices = @transform_0, window_bounds = array<i64: 1, 5, 192>}, {pipeline_mode = #tpu.pipeline_mode<synchronous>, transform_indices = @transform_1, window_bounds = array<i64: 192, 32>}, {pipeline_mode = #tpu.pipeline_mode<synchronous>, transform_indices = @transform_2, window_bounds = array<i64: 5, 32>}, {pipeline_mode = #tpu.pipeline_mode<synchronous>, transform_indices = @transform_3, window_bounds = array<i64: 4, 32>}, {transform_indices = @transform_4, window_bounds = array<i64: 1, 4, 32>}, {transform_indices = @transform_5, window_bounds = array<i64: 1, 3, 32, 32>}, {transform_indices = @transform_6, window_bounds = array<i64: 1, 3, 1, 32>}, {transform_indices = @transform_7, window_bounds = array<i64: 1, 32, 32>}, {transform_indices = @transform_8, window_bounds = array<i64: 1, 1, 32>}, {transform_indices = @transform_9, window_bounds = array<i64: 1, 32, 64>}, {transform_indices = @transform_10, window_bounds = array<i64: 1, 1, 64>}, {transform_indices = @transform_11, window_bounds = array<i64: 1, 64, 32>}, {transform_indices = @transform_12, window_bounds = array<i64: 1, 1, 32>}, {transform_indices = @transform_13, window_bounds = array<i64: 1, 1, 32>}]} {
    %c0 = arith.constant 0 : index
    %c0_0 = arith.constant 0 : index
    %0 = vector.load %arg5[%c0, %c0_0] : memref<4x32xf32, #tpu.memory_space<vmem>>, vector<4x32xf32>
    %c0_i32 = arith.constant 0 : i32
    %1 = arith.cmpi eq, %arg1, %c0_i32 : i32
    %2 = arith.extui %1 : i1 to i32
    %c0_i32_1 = arith.constant 0 : i32
    %3 = arith.cmpi ne, %2, %c0_i32_1 : i32
    scf.if %3 {
      %c0_87 = arith.constant 0 : index
      %c0_88 = arith.constant 0 : index
      %c0_89 = arith.constant 0 : index
      %199 = vector.load %arg2[%c0_87, %c0_88, %c0_89] : memref<1x5x192xbf16, #tpu.memory_space<vmem>>, vector<1x5x192xbf16>
      %200 = vector.shape_cast %199 : vector<1x5x192xbf16> to vector<5x192xbf16>
      %c0_90 = arith.constant 0 : index
      %c0_91 = arith.constant 0 : index
      %201 = vector.load %arg3[%c0_90, %c0_91] : memref<192x32xbf16, #tpu.memory_space<vmem>>, vector<192x32xbf16>
      %cst_92 = arith.constant dense<0.000000e+00> : vector<5x32xf32>
      %202 = tpu.matmul %200, %201, %cst_92 {dimension_numbers = #tpu.dot_dimension_numbers<[1], [0], [0], [1], [0, 0, 1, 1], [], []>} : vector<5x192xbf16>, vector<192x32xbf16>, vector<5x32xf32> -> vector<5x32xf32>
      %c0_93 = arith.constant 0 : index
      %c0_94 = arith.constant 0 : index
      %203 = vector.load %arg4[%c0_93, %c0_94] : memref<5x32xf32, #tpu.memory_space<vmem>>, vector<5x32xf32>
      %204 = arith.addf %202, %203 : vector<5x32xf32>
      %205 = vector.extract_strided_slice %0 {offsets = [0, 0], sizes = [1, 32], strides = [1, 1]} : vector<4x32xf32> to vector<1x32xf32>
      %206 = vector.shape_cast %205 : vector<1x32xf32> to vector<32xf32>
      %207 = vector.extract_strided_slice %0 {offsets = [1, 0], sizes = [1, 32], strides = [1, 1]} : vector<4x32xf32> to vector<1x32xf32>
      %208 = vector.shape_cast %207 : vector<1x32xf32> to vector<32xf32>
      %cst_95 = arith.constant dense<0.000000e+00> : vector<5xf32>
      %209 = vector.multi_reduction <add>, %204, %cst_95 [1] : vector<5x32xf32> to vector<5xf32>
      %210 = vector.shape_cast %209 : vector<5xf32> to vector<5x1xf32>
      %cst_96 = arith.constant 3.200000e+01 : f32
      %211 = vector.broadcast %cst_96 : f32 to vector<5x1xf32>
      %212 = arith.divf %210, %211 : vector<5x1xf32>
      %213 = vector.broadcast %212 : vector<5x1xf32> to vector<5x32xf32>
      %214 = arith.subf %204, %213 : vector<5x32xf32>
      %215 = arith.mulf %214, %214 : vector<5x32xf32>
      %cst_97 = arith.constant dense<0.000000e+00> : vector<5xf32>
      %216 = vector.multi_reduction <add>, %215, %cst_97 [1] : vector<5x32xf32> to vector<5xf32>
      %217 = vector.shape_cast %216 : vector<5xf32> to vector<5x1xf32>
      %cst_98 = arith.constant 3.200000e+01 : f32
      %218 = vector.broadcast %cst_98 : f32 to vector<5x1xf32>
      %219 = arith.divf %217, %218 : vector<5x1xf32>
      %220 = vector.broadcast %212 : vector<5x1xf32> to vector<5x32xf32>
      %221 = arith.subf %204, %220 : vector<5x32xf32>
      %cst_99 = arith.constant 9.99999974E-6 : f32
      %222 = vector.broadcast %cst_99 : f32 to vector<5x1xf32>
      %223 = arith.addf %219, %222 : vector<5x1xf32>
      %224 = math.rsqrt %223 : vector<5x1xf32>
      %225 = vector.broadcast %224 : vector<5x1xf32> to vector<5x32xf32>
      %226 = arith.mulf %221, %225 : vector<5x32xf32>
      %227 = vector.shape_cast %206 : vector<32xf32> to vector<1x32xf32>
      %228 = vector.broadcast %227 : vector<1x32xf32> to vector<5x32xf32>
      %229 = arith.mulf %226, %228 : vector<5x32xf32>
      %230 = vector.shape_cast %208 : vector<32xf32> to vector<1x32xf32>
      %231 = vector.broadcast %230 : vector<1x32xf32> to vector<5x32xf32>
      %232 = arith.addf %229, %231 : vector<5x32xf32>
      %c0_100 = arith.constant 0 : index
      %c0_101 = arith.constant 0 : index
      %233 = vector.load %arg16[%c0_100, %c0_101] : memref<5x32xf32, #tpu.memory_space<vmem>>, vector<5x32xf32>
      tpu.vector_store %arg16[%c0_100, %c0_101], %232 {strides = array<i32>} : memref<5x32xf32, #tpu.memory_space<vmem>>, vector<5x32xf32>,
    } else {
    }
    %c0_2 = arith.constant 0 : index
    %c0_3 = arith.constant 0 : index
    %4 = vector.load %arg16[%c0_2, %c0_3] : memref<5x32xf32, #tpu.memory_space<vmem>>, vector<5x32xf32>
    %c0_4 = arith.constant 0 : index
    %c0_5 = arith.constant 0 : index
    %c0_6 = arith.constant 0 : index
    %5 = vector.load %arg6[%c0_4, %c0_5, %c0_6] : memref<1x4x32xf32, #tpu.memory_space<vmem>>, vector<1x4x32xf32>
    %6 = vector.shape_cast %5 : vector<1x4x32xf32> to vector<4x32xf32>
    %7 = vector.extract_strided_slice %6 {offsets = [0, 0], sizes = [1, 32], strides = [1, 1]} : vector<4x32xf32> to vector<1x32xf32>
    %8 = vector.shape_cast %7 : vector<1x32xf32> to vector<32xf32>
    %9 = vector.extract_strided_slice %6 {offsets = [1, 0], sizes = [1, 32], strides = [1, 1]} : vector<4x32xf32> to vector<1x32xf32>
    %10 = vector.shape_cast %9 : vector<1x32xf32> to vector<32xf32>
    %cst = arith.constant dense<0.000000e+00> : vector<5xf32>
    %11 = vector.multi_reduction <add>, %4, %cst [1] : vector<5x32xf32> to vector<5xf32>
    %12 = vector.shape_cast %11 : vector<5xf32> to vector<5x1xf32>
    %cst_7 = arith.constant 3.200000e+01 : f32
    %13 = vector.broadcast %cst_7 : f32 to vector<5x1xf32>
    %14 = arith.divf %12, %13 : vector<5x1xf32>
    %15 = vector.broadcast %14 : vector<5x1xf32> to vector<5x32xf32>
    %16 = arith.subf %4, %15 : vector<5x32xf32>
    %17 = arith.mulf %16, %16 : vector<5x32xf32>
    %cst_8 = arith.constant dense<0.000000e+00> : vector<5xf32>
    %18 = vector.multi_reduction <add>, %17, %cst_8 [1] : vector<5x32xf32> to vector<5xf32>
    %19 = vector.shape_cast %18 : vector<5xf32> to vector<5x1xf32>
    %cst_9 = arith.constant 3.200000e+01 : f32
    %20 = vector.broadcast %cst_9 : f32 to vector<5x1xf32>
    %21 = arith.divf %19, %20 : vector<5x1xf32>
    %22 = vector.broadcast %14 : vector<5x1xf32> to vector<5x32xf32>
    %23 = arith.subf %4, %22 : vector<5x32xf32>
    %cst_10 = arith.constant 9.99999974E-6 : f32
    %24 = vector.broadcast %cst_10 : f32 to vector<5x1xf32>
    %25 = arith.addf %21, %24 : vector<5x1xf32>
    %26 = math.rsqrt %25 : vector<5x1xf32>
    %27 = vector.broadcast %26 : vector<5x1xf32> to vector<5x32xf32>
    %28 = arith.mulf %23, %27 : vector<5x32xf32>
    %29 = vector.shape_cast %8 : vector<32xf32> to vector<1x32xf32>
    %30 = vector.broadcast %29 : vector<1x32xf32> to vector<5x32xf32>
    %31 = arith.mulf %28, %30 : vector<5x32xf32>
    %32 = vector.shape_cast %10 : vector<32xf32> to vector<1x32xf32>
    %33 = vector.broadcast %32 : vector<1x32xf32> to vector<5x32xf32>
    %34 = arith.addf %31, %33 : vector<5x32xf32>
    %35 = arith.truncf %34 : vector<5x32xf32> to vector<5x32xbf16>
    %c0_11 = arith.constant 0 : index
    %c0_12 = arith.constant 0 : index
    %c0_13 = arith.constant 0 : index
    %c0_14 = arith.constant 0 : index
    %36 = vector.load %arg7[%c0_11, %c0_12, %c0_13, %c0_14] : memref<1x3x32x32xbf16, #tpu.memory_space<vmem>>, vector<1x1x32x32xbf16>
    %37 = vector.shape_cast %36 : vector<1x1x32x32xbf16> to vector<32x32xbf16>
    %cst_15 = arith.constant dense<0.000000e+00> : vector<5x32xf32>
    %38 = tpu.matmul %35, %37, %cst_15 {dimension_numbers = #tpu.dot_dimension_numbers<[1], [0], [0], [1], [0, 0, 1, 1], [], []>} : vector<5x32xbf16>, vector<32x32xbf16>, vector<5x32xf32> -> vector<5x32xf32>
    %c0_16 = arith.constant 0 : index
    %c0_17 = arith.constant 0 : index
    %c0_18 = arith.constant 0 : index
    %c0_19 = arith.constant 0 : index
    %39 = vector.load %arg8[%c0_16, %c0_17, %c0_18, %c0_19] : memref<1x3x1x32xf32, #tpu.memory_space<vmem>>, vector<1x1x1x32xf32>
    %40 = vector.shape_cast %39 : vector<1x1x1x32xf32> to vector<1x32xf32>
    %41 = vector.broadcast %40 : vector<1x32xf32> to vector<5x32xf32>
    %42 = arith.addf %38, %41 : vector<5x32xf32>
    %c0_20 = arith.constant 0 : index
    %c1 = arith.constant 1 : index
    %c0_21 = arith.constant 0 : index
    %c0_22 = arith.constant 0 : index
    %43 = vector.load %arg7[%c0_20, %c1, %c0_21, %c0_22] : memref<1x3x32x32xbf16, #tpu.memory_space<vmem>>, vector<1x1x32x32xbf16>
    %44 = vector.shape_cast %43 : vector<1x1x32x32xbf16> to vector<32x32xbf16>
    %cst_23 = arith.constant dense<0.000000e+00> : vector<5x32xf32>
    %45 = tpu.matmul %35, %44, %cst_23 {dimension_numbers = #tpu.dot_dimension_numbers<[1], [0], [0], [1], [0, 0, 1, 1], [], []>} : vector<5x32xbf16>, vector<32x32xbf16>, vector<5x32xf32> -> vector<5x32xf32>
    %c0_24 = arith.constant 0 : index
    %c1_25 = arith.constant 1 : index
    %c0_26 = arith.constant 0 : index
    %c0_27 = arith.constant 0 : index
    %46 = vector.load %arg8[%c0_24, %c1_25, %c0_26, %c0_27] : memref<1x3x1x32xf32, #tpu.memory_space<vmem>>, vector<1x1x1x32xf32>
    %47 = vector.shape_cast %46 : vector<1x1x1x32xf32> to vector<1x32xf32>
    %48 = vector.broadcast %47 : vector<1x32xf32> to vector<5x32xf32>
    %49 = arith.addf %45, %48 : vector<5x32xf32>
    %c0_28 = arith.constant 0 : index
    %c2 = arith.constant 2 : index
    %c0_29 = arith.constant 0 : index
    %c0_30 = arith.constant 0 : index
    %50 = vector.load %arg7[%c0_28, %c2, %c0_29, %c0_30] : memref<1x3x32x32xbf16, #tpu.memory_space<vmem>>, vector<1x1x32x32xbf16>
    %51 = vector.shape_cast %50 : vector<1x1x32x32xbf16> to vector<32x32xbf16>
    %cst_31 = arith.constant dense<0.000000e+00> : vector<5x32xf32>
    %52 = tpu.matmul %35, %51, %cst_31 {dimension_numbers = #tpu.dot_dimension_numbers<[1], [0], [0], [1], [0, 0, 1, 1], [], []>} : vector<5x32xbf16>, vector<32x32xbf16>, vector<5x32xf32> -> vector<5x32xf32>
    %c0_32 = arith.constant 0 : index
    %c2_33 = arith.constant 2 : index
    %c0_34 = arith.constant 0 : index
    %c0_35 = arith.constant 0 : index
    %53 = vector.load %arg8[%c0_32, %c2_33, %c0_34, %c0_35] : memref<1x3x1x32xf32, #tpu.memory_space<vmem>>, vector<1x1x1x32xf32>
    %54 = vector.shape_cast %53 : vector<1x1x1x32xf32> to vector<1x32xf32>
    %55 = vector.broadcast %54 : vector<1x32xf32> to vector<5x32xf32>
    %56 = arith.addf %52, %55 : vector<5x32xf32>
    %57 = arith.truncf %42 : vector<5x32xf32> to vector<5x32xbf16>
    %58 = arith.truncf %49 : vector<5x32xf32> to vector<5x32xbf16>
    %59 = arith.truncf %56 : vector<5x32xf32> to vector<5x32xbf16>
    %60 = vector.extract_strided_slice %57 {offsets = [0, 0], sizes = [5, 8], strides = [1, 1]} : vector<5x32xbf16> to vector<5x8xbf16>
    %61 = vector.extract_strided_slice %58 {offsets = [0, 0], sizes = [5, 8], strides = [1, 1]} : vector<5x32xbf16> to vector<5x8xbf16>
    %cst_36 = arith.constant dense<0.000000e+00> : vector<5x5xf32>
    %62 = tpu.matmul %60, %61, %cst_36 {dimension_numbers = #tpu.dot_dimension_numbers<[1], [1], [0], [0], [0, 0, 1, 0], [], []>} : vector<5x8xbf16>, vector<5x8xbf16>, vector<5x5xf32> -> vector<5x5xf32>
    %cst_37 = arith.constant 0.353553385 : f32
    %63 = vector.broadcast %cst_37 : f32 to vector<5x5xf32>
    %64 = arith.mulf %62, %63 : vector<5x5xf32>
    %cst_38 = arith.constant dense<0xFF800000> : vector<5xf32>
    %65 = vector.multi_reduction <maximumf>, %64, %cst_38 [1] : vector<5x5xf32> to vector<5xf32>
    %66 = vector.shape_cast %65 : vector<5xf32> to vector<5x1xf32>
    %67 = vector.broadcast %66 : vector<5x1xf32> to vector<5x5xf32>
    %68 = arith.subf %64, %67 : vector<5x5xf32>
    %69 = math.exp %68 : vector<5x5xf32>
    %cst_39 = arith.constant dense<0.000000e+00> : vector<5xf32>
    %70 = vector.multi_reduction <add>, %69, %cst_39 [1] : vector<5x5xf32> to vector<5xf32>
    %71 = vector.shape_cast %70 : vector<5xf32> to vector<5x1xf32>
    %72 = tpu.reciprocal %71 {approx = true} : vector<5x1xf32> -> vector<5x1xf32>
    %73 = vector.broadcast %72 : vector<5x1xf32> to vector<5x5xf32>
    %74 = arith.mulf %69, %73 : vector<5x5xf32>
    %75 = arith.truncf %74 : vector<5x5xf32> to vector<5x5xbf16>
    %76 = vector.extract_strided_slice %59 {offsets = [0, 0], sizes = [5, 8], strides = [1, 1]} : vector<5x32xbf16> to vector<5x8xbf16>
    %cst_40 = arith.constant dense<0.000000e+00> : vector<5x8xf32>
    %77 = tpu.matmul %75, %76, %cst_40 {dimension_numbers = #tpu.dot_dimension_numbers<[1], [0], [0], [1], [0, 0, 1, 1], [], []>} : vector<5x5xbf16>, vector<5x8xbf16>, vector<5x8xf32> -> vector<5x8xf32>
    %78 = vector.extract_strided_slice %57 {offsets = [0, 8], sizes = [5, 8], strides = [1, 1]} : vector<5x32xbf16> to vector<5x8xbf16>
    %79 = vector.extract_strided_slice %58 {offsets = [0, 8], sizes = [5, 8], strides = [1, 1]} : vector<5x32xbf16> to vector<5x8xbf16>
    %cst_41 = arith.constant dense<0.000000e+00> : vector<5x5xf32>
    %80 = tpu.matmul %78, %79, %cst_41 {dimension_numbers = #tpu.dot_dimension_numbers<[1], [1], [0], [0], [0, 0, 1, 0], [], []>} : vector<5x8xbf16>, vector<5x8xbf16>, vector<5x5xf32> -> vector<5x5xf32>
    %cst_42 = arith.constant 0.353553385 : f32
    %81 = vector.broadcast %cst_42 : f32 to vector<5x5xf32>
    %82 = arith.mulf %80, %81 : vector<5x5xf32>
    %cst_43 = arith.constant dense<0xFF800000> : vector<5xf32>
    %83 = vector.multi_reduction <maximumf>, %82, %cst_43 [1] : vector<5x5xf32> to vector<5xf32>
    %84 = vector.shape_cast %83 : vector<5xf32> to vector<5x1xf32>
    %85 = vector.broadcast %84 : vector<5x1xf32> to vector<5x5xf32>
    %86 = arith.subf %82, %85 : vector<5x5xf32>
    %87 = math.exp %86 : vector<5x5xf32>
    %cst_44 = arith.constant dense<0.000000e+00> : vector<5xf32>
    %88 = vector.multi_reduction <add>, %87, %cst_44 [1] : vector<5x5xf32> to vector<5xf32>
    %89 = vector.shape_cast %88 : vector<5xf32> to vector<5x1xf32>
    %90 = tpu.reciprocal %89 {approx = true} : vector<5x1xf32> -> vector<5x1xf32>
    %91 = vector.broadcast %90 : vector<5x1xf32> to vector<5x5xf32>
    %92 = arith.mulf %87, %91 : vector<5x5xf32>
    %93 = arith.truncf %92 : vector<5x5xf32> to vector<5x5xbf16>
    %94 = vector.extract_strided_slice %59 {offsets = [0, 8], sizes = [5, 8], strides = [1, 1]} : vector<5x32xbf16> to vector<5x8xbf16>
    %cst_45 = arith.constant dense<0.000000e+00> : vector<5x8xf32>
    %95 = tpu.matmul %93, %94, %cst_45 {dimension_numbers = #tpu.dot_dimension_numbers<[1], [0], [0], [1], [0, 0, 1, 1], [], []>} : vector<5x5xbf16>, vector<5x8xbf16>, vector<5x8xf32> -> vector<5x8xf32>
    %96 = vector.extract_strided_slice %57 {offsets = [0, 16], sizes = [5, 8], strides = [1, 1]} : vector<5x32xbf16> to vector<5x8xbf16>
    %97 = vector.extract_strided_slice %58 {offsets = [0, 16], sizes = [5, 8], strides = [1, 1]} : vector<5x32xbf16> to vector<5x8xbf16>
    %cst_46 = arith.constant dense<0.000000e+00> : vector<5x5xf32>
    %98 = tpu.matmul %96, %97, %cst_46 {dimension_numbers = #tpu.dot_dimension_numbers<[1], [1], [0], [0], [0, 0, 1, 0], [], []>} : vector<5x8xbf16>, vector<5x8xbf16>, vector<5x5xf32> -> vector<5x5xf32>
    %cst_47 = arith.constant 0.353553385 : f32
    %99 = vector.broadcast %cst_47 : f32 to vector<5x5xf32>
    %100 = arith.mulf %98, %99 : vector<5x5xf32>
    %cst_48 = arith.constant dense<0xFF800000> : vector<5xf32>
    %101 = vector.multi_reduction <maximumf>, %100, %cst_48 [1] : vector<5x5xf32> to vector<5xf32>
    %102 = vector.shape_cast %101 : vector<5xf32> to vector<5x1xf32>
    %103 = vector.broadcast %102 : vector<5x1xf32> to vector<5x5xf32>
    %104 = arith.subf %100, %103 : vector<5x5xf32>
    %105 = math.exp %104 : vector<5x5xf32>
    %cst_49 = arith.constant dense<0.000000e+00> : vector<5xf32>
    %106 = vector.multi_reduction <add>, %105, %cst_49 [1] : vector<5x5xf32> to vector<5xf32>
    %107 = vector.shape_cast %106 : vector<5xf32> to vector<5x1xf32>
    %108 = tpu.reciprocal %107 {approx = true} : vector<5x1xf32> -> vector<5x1xf32>
    %109 = vector.broadcast %108 : vector<5x1xf32> to vector<5x5xf32>
    %110 = arith.mulf %105, %109 : vector<5x5xf32>
    %111 = arith.truncf %110 : vector<5x5xf32> to vector<5x5xbf16>
    %112 = vector.extract_strided_slice %59 {offsets = [0, 16], sizes = [5, 8], strides = [1, 1]} : vector<5x32xbf16> to vector<5x8xbf16>
    %cst_50 = arith.constant dense<0.000000e+00> : vector<5x8xf32>
    %113 = tpu.matmul %111, %112, %cst_50 {dimension_numbers = #tpu.dot_dimension_numbers<[1], [0], [0], [1], [0, 0, 1, 1], [], []>} : vector<5x5xbf16>, vector<5x8xbf16>, vector<5x8xf32> -> vector<5x8xf32>
    %114 = vector.extract_strided_slice %57 {offsets = [0, 24], sizes = [5, 8], strides = [1, 1]} : vector<5x32xbf16> to vector<5x8xbf16>
    %115 = vector.extract_strided_slice %58 {offsets = [0, 24], sizes = [5, 8], strides = [1, 1]} : vector<5x32xbf16> to vector<5x8xbf16>
    %cst_51 = arith.constant dense<0.000000e+00> : vector<5x5xf32>
    %116 = tpu.matmul %114, %115, %cst_51 {dimension_numbers = #tpu.dot_dimension_numbers<[1], [1], [0], [0], [0, 0, 1, 0], [], []>} : vector<5x8xbf16>, vector<5x8xbf16>, vector<5x5xf32> -> vector<5x5xf32>
    %cst_52 = arith.constant 0.353553385 : f32
    %117 = vector.broadcast %cst_52 : f32 to vector<5x5xf32>
    %118 = arith.mulf %116, %117 : vector<5x5xf32>
    %cst_53 = arith.constant dense<0xFF800000> : vector<5xf32>
    %119 = vector.multi_reduction <maximumf>, %118, %cst_53 [1] : vector<5x5xf32> to vector<5xf32>
    %120 = vector.shape_cast %119 : vector<5xf32> to vector<5x1xf32>
    %121 = vector.broadcast %120 : vector<5x1xf32> to vector<5x5xf32>
    %122 = arith.subf %118, %121 : vector<5x5xf32>
    %123 = math.exp %122 : vector<5x5xf32>
    %cst_54 = arith.constant dense<0.000000e+00> : vector<5xf32>
    %124 = vector.multi_reduction <add>, %123, %cst_54 [1] : vector<5x5xf32> to vector<5xf32>
    %125 = vector.shape_cast %124 : vector<5xf32> to vector<5x1xf32>
    %126 = tpu.reciprocal %125 {approx = true} : vector<5x1xf32> -> vector<5x1xf32>
    %127 = vector.broadcast %126 : vector<5x1xf32> to vector<5x5xf32>
    %128 = arith.mulf %123, %127 : vector<5x5xf32>
    %129 = arith.truncf %128 : vector<5x5xf32> to vector<5x5xbf16>
    %130 = vector.extract_strided_slice %59 {offsets = [0, 24], sizes = [5, 8], strides = [1, 1]} : vector<5x32xbf16> to vector<5x8xbf16>
    %cst_55 = arith.constant dense<0.000000e+00> : vector<5x8xf32>
    %131 = tpu.matmul %129, %130, %cst_55 {dimension_numbers = #tpu.dot_dimension_numbers<[1], [0], [0], [1], [0, 0, 1, 1], [], []>} : vector<5x5xbf16>, vector<5x8xbf16>, vector<5x8xf32> -> vector<5x8xf32>
    %132 = tpu.concatenate %77, %95, %113, %131 in 1 : vector<5x8xf32>, vector<5x8xf32>, vector<5x8xf32>, vector<5x8xf32> -> vector<5x32xf32>
    %133 = arith.truncf %132 : vector<5x32xf32> to vector<5x32xbf16>
    %c0_56 = arith.constant 0 : index
    %c0_57 = arith.constant 0 : index
    %c0_58 = arith.constant 0 : index
    %134 = vector.load %arg9[%c0_56, %c0_57, %c0_58] : memref<1x32x32xbf16, #tpu.memory_space<vmem>>, vector<1x32x32xbf16>
    %135 = vector.shape_cast %134 : vector<1x32x32xbf16> to vector<32x32xbf16>
    %cst_59 = arith.constant dense<0.000000e+00> : vector<5x32xf32>
    %136 = tpu.matmul %133, %135, %cst_59 {dimension_numbers = #tpu.dot_dimension_numbers<[1], [0], [0], [1], [0, 0, 1, 1], [], []>} : vector<5x32xbf16>, vector<32x32xbf16>, vector<5x32xf32> -> vector<5x32xf32>
    %c0_60 = arith.constant 0 : index
    %c0_61 = arith.constant 0 : index
    %c0_62 = arith.constant 0 : index
    %137 = vector.load %arg10[%c0_60, %c0_61, %c0_62] : memref<1x1x32xf32, #tpu.memory_space<vmem>>, vector<1x1x32xf32>
    %138 = vector.shape_cast %137 : vector<1x1x32xf32> to vector<1x32xf32>
    %139 = vector.broadcast %138 : vector<1x32xf32> to vector<5x32xf32>
    %140 = arith.addf %136, %139 : vector<5x32xf32>
    %141 = arith.addf %4, %140 : vector<5x32xf32>
    %142 = vector.extract_strided_slice %6 {offsets = [2, 0], sizes = [1, 32], strides = [1, 1]} : vector<4x32xf32> to vector<1x32xf32>
    %143 = vector.shape_cast %142 : vector<1x32xf32> to vector<32xf32>
    %144 = vector.extract_strided_slice %6 {offsets = [3, 0], sizes = [1, 32], strides = [1, 1]} : vector<4x32xf32> to vector<1x32xf32>
    %145 = vector.shape_cast %144 : vector<1x32xf32> to vector<32xf32>
    %cst_63 = arith.constant dense<0.000000e+00> : vector<5xf32>
    %146 = vector.multi_reduction <add>, %141, %cst_63 [1] : vector<5x32xf32> to vector<5xf32>
    %147 = vector.shape_cast %146 : vector<5xf32> to vector<5x1xf32>
    %cst_64 = arith.constant 3.200000e+01 : f32
    %148 = vector.broadcast %cst_64 : f32 to vector<5x1xf32>
    %149 = arith.divf %147, %148 : vector<5x1xf32>
    %150 = vector.broadcast %149 : vector<5x1xf32> to vector<5x32xf32>
    %151 = arith.subf %141, %150 : vector<5x32xf32>
    %152 = arith.mulf %151, %151 : vector<5x32xf32>
    %cst_65 = arith.constant dense<0.000000e+00> : vector<5xf32>
    %153 = vector.multi_reduction <add>, %152, %cst_65 [1] : vector<5x32xf32> to vector<5xf32>
    %154 = vector.shape_cast %153 : vector<5xf32> to vector<5x1xf32>
    %cst_66 = arith.constant 3.200000e+01 : f32
    %155 = vector.broadcast %cst_66 : f32 to vector<5x1xf32>
    %156 = arith.divf %154, %155 : vector<5x1xf32>
    %157 = vector.broadcast %149 : vector<5x1xf32> to vector<5x32xf32>
    %158 = arith.subf %141, %157 : vector<5x32xf32>
    %cst_67 = arith.constant 9.99999974E-6 : f32
    %159 = vector.broadcast %cst_67 : f32 to vector<5x1xf32>
    %160 = arith.addf %156, %159 : vector<5x1xf32>
    %161 = math.rsqrt %160 : vector<5x1xf32>
    %162 = vector.broadcast %161 : vector<5x1xf32> to vector<5x32xf32>
    %163 = arith.mulf %158, %162 : vector<5x32xf32>
    %164 = vector.shape_cast %143 : vector<32xf32> to vector<1x32xf32>
    %165 = vector.broadcast %164 : vector<1x32xf32> to vector<5x32xf32>
    %166 = arith.mulf %163, %165 : vector<5x32xf32>
    %167 = vector.shape_cast %145 : vector<32xf32> to vector<1x32xf32>
    %168 = vector.broadcast %167 : vector<1x32xf32> to vector<5x32xf32>
    %169 = arith.addf %166, %168 : vector<5x32xf32>
    %170 = arith.truncf %169 : vector<5x32xf32> to vector<5x32xbf16>
    %c0_68 = arith.constant 0 : index
    %c0_69 = arith.constant 0 : index
    %c0_70 = arith.constant 0 : index
    %171 = vector.load %arg11[%c0_68, %c0_69, %c0_70] : memref<1x32x64xbf16, #tpu.memory_space<vmem>>, vector<1x32x64xbf16>
    %172 = vector.shape_cast %171 : vector<1x32x64xbf16> to vector<32x64xbf16>
    %cst_71 = arith.constant dense<0.000000e+00> : vector<5x64xf32>
    %173 = tpu.matmul %170, %172, %cst_71 {dimension_numbers = #tpu.dot_dimension_numbers<[1], [0], [0], [1], [0, 0, 1, 1], [], []>} : vector<5x32xbf16>, vector<32x64xbf16>, vector<5x64xf32> -> vector<5x64xf32>
    %c0_72 = arith.constant 0 : index
    %c0_73 = arith.constant 0 : index
    %c0_74 = arith.constant 0 : index
    %174 = vector.load %arg12[%c0_72, %c0_73, %c0_74] : memref<1x1x64xf32, #tpu.memory_space<vmem>>, vector<1x1x64xf32>
    %175 = vector.shape_cast %174 : vector<1x1x64xf32> to vector<1x64xf32>
    %176 = vector.broadcast %175 : vector<1x64xf32> to vector<5x64xf32>
    %177 = arith.addf %173, %176 : vector<5x64xf32>
    %cst_75 = arith.constant 1.702000e+00 : f32
    %178 = vector.broadcast %cst_75 : f32 to vector<5x64xf32>
    %179 = arith.mulf %178, %177 : vector<5x64xf32>
    %180 = arith.negf %179 : vector<5x64xf32>
    %181 = math.exp %180 : vector<5x64xf32>
    %cst_76 = arith.constant 1.000000e+00 : f32
    %182 = vector.broadcast %cst_76 : f32 to vector<5x64xf32>
    %183 = arith.addf %182, %181 : vector<5x64xf32>
    %184 = arith.divf %182, %183 : vector<5x64xf32>
    %185 = arith.mulf %177, %184 : vector<5x64xf32>
    %186 = arith.truncf %185 : vector<5x64xf32> to vector<5x64xbf16>
    %c0_77 = arith.constant 0 : index
    %c0_78 = arith.constant 0 : index
    %c0_79 = arith.constant 0 : index
    %187 = vector.load %arg13[%c0_77, %c0_78, %c0_79] : memref<1x64x32xbf16, #tpu.memory_space<vmem>>, vector<1x64x32xbf16>
    %188 = vector.shape_cast %187 : vector<1x64x32xbf16> to vector<64x32xbf16>
    %cst_80 = arith.constant dense<0.000000e+00> : vector<5x32xf32>
    %189 = tpu.matmul %186, %188, %cst_80 {dimension_numbers = #tpu.dot_dimension_numbers<[1], [0], [0], [1], [0, 0, 1, 1], [], []>} : vector<5x64xbf16>, vector<64x32xbf16>, vector<5x32xf32> -> vector<5x32xf32>
    %c0_81 = arith.constant 0 : index
    %c0_82 = arith.constant 0 : index
    %c0_83 = arith.constant 0 : index
    %190 = vector.load %arg14[%c0_81, %c0_82, %c0_83] : memref<1x1x32xf32, #tpu.memory_space<vmem>>, vector<1x1x32xf32>
    %191 = vector.shape_cast %190 : vector<1x1x32xf32> to vector<1x32xf32>
    %192 = vector.broadcast %191 : vector<1x32xf32> to vector<5x32xf32>
    %193 = arith.addf %189, %192 : vector<5x32xf32>
    %194 = arith.addf %141, %193 : vector<5x32xf32>
    %c0_84 = arith.constant 0 : index
    %c0_85 = arith.constant 0 : index
    %195 = vector.load %arg16[%c0_84, %c0_85] : memref<5x32xf32, #tpu.memory_space<vmem>>, vector<5x32xf32>
    tpu.vector_store %arg16[%c0_84, %c0_85], %194 {strides = array<i32>} : memref<5x32xf32, #tpu.memory_space<vmem>>, vector<5x32xf32>,
    %c1_i32 = arith.constant 1 : i32
    %196 = arith.cmpi eq, %arg1, %c1_i32 : i32
    %197 = arith.extui %196 : i1 to i32
    %c0_i32_86 = arith.constant 0 : i32
    %198 = arith.cmpi ne, %197, %c0_i32_86 : i32
    scf.if %198 {
      %199 = vector.extract_strided_slice %194 {offsets = [0, 0], sizes = [1, 32], strides = [1, 1]} : vector<5x32xf32> to vector<1x32xf32>
      %200 = vector.extract_strided_slice %0 {offsets = [2, 0], sizes = [1, 32], strides = [1, 1]} : vector<4x32xf32> to vector<1x32xf32>
      %201 = vector.shape_cast %200 : vector<1x32xf32> to vector<32xf32>
      %202 = vector.extract_strided_slice %0 {offsets = [3, 0], sizes = [1, 32], strides = [1, 1]} : vector<4x32xf32> to vector<1x32xf32>
      %203 = vector.shape_cast %202 : vector<1x32xf32> to vector<32xf32>
      %cst_87 = arith.constant dense<0.000000e+00> : vector<1xf32>
      %204 = vector.multi_reduction <add>, %199, %cst_87 [1] : vector<1x32xf32> to vector<1xf32>
      %205 = vector.shape_cast %204 : vector<1xf32> to vector<1x1xf32>
      %cst_88 = arith.constant 3.200000e+01 : f32
      %206 = vector.broadcast %cst_88 : f32 to vector<1x1xf32>
      %207 = arith.divf %205, %206 : vector<1x1xf32>
      %208 = vector.broadcast %207 : vector<1x1xf32> to vector<1x32xf32>
      %209 = arith.subf %199, %208 : vector<1x32xf32>
      %210 = arith.mulf %209, %209 : vector<1x32xf32>
      %cst_89 = arith.constant dense<0.000000e+00> : vector<1xf32>
      %211 = vector.multi_reduction <add>, %210, %cst_89 [1] : vector<1x32xf32> to vector<1xf32>
      %212 = vector.shape_cast %211 : vector<1xf32> to vector<1x1xf32>
      %cst_90 = arith.constant 3.200000e+01 : f32
      %213 = vector.broadcast %cst_90 : f32 to vector<1x1xf32>
      %214 = arith.divf %212, %213 : vector<1x1xf32>
      %215 = vector.broadcast %207 : vector<1x1xf32> to vector<1x32xf32>
      %216 = arith.subf %199, %215 : vector<1x32xf32>
      %cst_91 = arith.constant 9.99999974E-6 : f32
      %217 = vector.broadcast %cst_91 : f32 to vector<1x1xf32>
      %218 = arith.addf %214, %217 : vector<1x1xf32>
      %219 = math.rsqrt %218 : vector<1x1xf32>
      %220 = vector.broadcast %219 : vector<1x1xf32> to vector<1x32xf32>
      %221 = arith.mulf %216, %220 : vector<1x32xf32>
      %222 = vector.shape_cast %201 : vector<32xf32> to vector<1x32xf32>
      %223 = arith.mulf %221, %222 : vector<1x32xf32>
      %224 = vector.shape_cast %203 : vector<32xf32> to vector<1x32xf32>
      %225 = arith.addf %223, %224 : vector<1x32xf32>
      %c0_92 = arith.constant 0 : index
      %c0_93 = arith.constant 0 : index
      %c0_94 = arith.constant 0 : index
      %226 = vector.load %arg15[%c0_92, %c0_93, %c0_94] : memref<1x1x32xf32, #tpu.memory_space<vmem>>, vector<1x1x32xf32>
      %227 = vector.shape_cast %226 : vector<1x1x32xf32> to vector<1x32xf32>
      %228 = vector.shape_cast %225 : vector<1x32xf32> to vector<1x1x32xf32>
      tpu.vector_store %arg15[%c0_92, %c0_93, %c0_94], %228 {strides = array<i32>} : memref<1x1x32xf32, #tpu.memory_space<vmem>>, vector<1x1x32xf32>,
    } else {
    }
    return
  }
  func.func @transform_0(%arg0: i32, %arg1: i32) -> (i32, i32, i32) {
    %c0_i32 = arith.constant 0 : i32
    %c0_i32_0 = arith.constant 0 : i32
    %c0_i32_1 = arith.constant 0 : i32
    return %arg0, %c0_i32, %c0_i32_0 : i32, i32, i32
  }
  func.func @transform_1(%arg0: i32, %arg1: i32) -> (i32, i32) {
    %c0_i32 = arith.constant 0 : i32
    %c0_i32_0 = arith.constant 0 : i32
    %c0_i32_1 = arith.constant 0 : i32
    return %c0_i32, %c0_i32_0 : i32, i32
  }
  func.func @transform_2(%arg0: i32, %arg1: i32) -> (i32, i32) {
    %c0_i32 = arith.constant 0 : i32
    %c0_i32_0 = arith.constant 0 : i32
    %c0_i32_1 = arith.constant 0 : i32
    return %c0_i32, %c0_i32_0 : i32, i32
  }
  func.func @transform_3(%arg0: i32, %arg1: i32) -> (i32, i32) {
    %c0_i32 = arith.constant 0 : i32
    %c0_i32_0 = arith.constant 0 : i32
    %c0_i32_1 = arith.constant 0 : i32
    return %c0_i32, %c0_i32_0 : i32, i32
  }
  func.func @transform_4(%arg0: i32, %arg1: i32) -> (i32, i32, i32) {
    %c0_i32 = arith.constant 0 : i32
    %c0_i32_0 = arith.constant 0 : i32
    %c0_i32_1 = arith.constant 0 : i32
    return %arg1, %c0_i32, %c0_i32_0 : i32, i32, i32
  }
  func.func @transform_5(%arg0: i32, %arg1: i32) -> (i32, i32, i32, i32) {
    %c0_i32 = arith.constant 0 : i32
    %c0_i32_0 = arith.constant 0 : i32
    %c0_i32_1 = arith.constant 0 : i32
    %c0_i32_2 = arith.constant 0 : i32
    return %arg1, %c0_i32, %c0_i32_0, %c0_i32_1 : i32, i32, i32, i32
  }
  func.func @transform_6(%arg0: i32, %arg1: i32) -> (i32, i32, i32, i32) {
    %c0_i32 = arith.constant 0 : i32
    %c0_i32_0 = arith.constant 0 : i32
    %c0_i32_1 = arith.constant 0 : i32
    %c0_i32_2 = arith.constant 0 : i32
    return %arg1, %c0_i32, %c0_i32_0, %c0_i32_1 : i32, i32, i32, i32
  }
  func.func @transform_7(%arg0: i32, %arg1: i32) -> (i32, i32, i32) {
    %c0_i32 = arith.constant 0 : i32
    %c0_i32_0 = arith.constant 0 : i32
    %c0_i32_1 = arith.constant 0 : i32
    return %arg1, %c0_i32, %c0_i32_0 : i32, i32, i32
  }
  func.func @transform_8(%arg0: i32, %arg1: i32) -> (i32, i32, i32) {
    %c0_i32 = arith.constant 0 : i32
    %c0_i32_0 = arith.constant 0 : i32
    %c0_i32_1 = arith.constant 0 : i32
    return %arg1, %c0_i32, %c0_i32_0 : i32, i32, i32
  }
  func.func @transform_9(%arg0: i32, %arg1: i32) -> (i32, i32, i32) {
    %c0_i32 = arith.constant 0 : i32
    %c0_i32_0 = arith.constant 0 : i32
    %c0_i32_1 = arith.constant 0 : i32
    return %arg1, %c0_i32, %c0_i32_0 : i32, i32, i32
  }
  func.func @transform_10(%arg0: i32, %arg1: i32) -> (i32, i32, i32) {
    %c0_i32 = arith.constant 0 : i32
    %c0_i32_0 = arith.constant 0 : i32
    %c0_i32_1 = arith.constant 0 : i32
    return %arg1, %c0_i32, %c0_i32_0 : i32, i32, i32
  }
  func.func @transform_11(%arg0: i32, %arg1: i32) -> (i32, i32, i32) {
    %c0_i32 = arith.constant 0 : i32
    %c0_i32_0 = arith.constant 0 : i32
    %c0_i32_1 = arith.constant 0 : i32
    return %arg1, %c0_i32, %c0_i32_0 : i32, i32, i32
  }
  func.func @transform_12(%arg0: i32, %arg1: i32) -> (i32, i32, i32) {
    %c0_i32 = arith.constant 0 : i32
    %c0_i32_0 = arith.constant 0 : i32
    %c0_i32_1 = arith.constant 0 : i32
    return %arg1, %c0_i32, %c0_i32_0 : i32, i32, i32
  }
  func.func @transform_13(%arg0: i32, %arg1: i32) -> (i32, i32, i32) {
    %c0_i32 = arith.constant 0 : i32
    %c0_i32_0 = arith.constant 0 : i32
    %c0_i32_1 = arith.constant 0 : i32
    return %arg0, %c0_i32, %c0_i32_0 : i32, i32, i32
  }
}

</mosaic_0001>

<llo_original>
// kernel: clip_vision_forward.1
$region0: #{clip_vision_forward.1}
  #allocation0 [shape = 'u32[]', space=smem, size = 0x4, offset = 0x4, fixed_abs, tag = 'smem constant byte address 0x4 - core index']
  #allocation1 [shape = 'u32[144,128]{1,0:T(1,128)}', space=vmem, size = 0x12000, scoped, tag = 'internal scratch']
  #allocation2 [shape = 'f32[5,32]{1,0:T(8,128)}', space=vmem, size = 0x1000, scoped, tag = 'scratch operand']
  %s0 = inlined_call_operand.vmem [shape: bf16[2,5,192], index: 0, kind: input, shape index: {}]
  %s1 = inlined_call_operand.vmem [shape: bf16[192,32], index: 1, kind: input, shape index: {}]
  %s2 = inlined_call_operand.vmem [shape: f32[5,32], index: 2, kind: input, shape index: {}]
  %s3 = inlined_call_operand.vmem [shape: f32[4,32], index: 3, kind: input, shape index: {}]
  %s4 = inlined_call_operand.vmem [shape: f32[2,4,32], index: 4, kind: input, shape index: {}]
  %s5 = inlined_call_operand.vmem [shape: bf16[2,3,32,32], index: 5, kind: input, shape index: {}]
  %s6 = inlined_call_operand.vmem [shape: f32[2,3,1,32], index: 6, kind: input, shape index: {}]
  %s7 = inlined_call_operand.vmem [shape: bf16[2,32,32], index: 7, kind: input, shape index: {}]
  %s8 = inlined_call_operand.vmem [shape: f32[2,1,32], index: 8, kind: input, shape index: {}]
  %s9 = inlined_call_operand.vmem [shape: bf16[2,32,64], index: 9, kind: input, shape index: {}]
  %s10 = inlined_call_operand.vmem [shape: f32[2,1,64], index: 10, kind: input, shape index: {}]
  %s11 = inlined_call_operand.vmem [shape: bf16[2,64,32], index: 11, kind: input, shape index: {}]
  %s12 = inlined_call_operand.vmem [shape: f32[2,1,32], index: 12, kind: input, shape index: {}]
  %s13 = inlined_call_operand.hbm [shape: f32[2,1,32], index: 13, kind: output, shape index: {}]
  %s14 = sld [smem:[#allocation0]]
  $region93: #{clip_vision_forward.1} parent=0
    _
  %s16 = ssub.s32 1, %s14
  %s17 = scalar_select 0, %s16, %s14
  $region1: #{clip_vision_forward.1} parent=0
    #allocation3 [shape = 'u8[1024]{0}', space=vmem, size = 0x400, scoped, tag = 'output window, operand 0']
    #allocation4 [shape = 's32[2]{0}', space=sflag, size = 0x8, scoped, tag = 'scoped memory for clip_vision_forward.1']
    %18 = vsyncpa [#allocation4], 0
    %s19 = scalar_lea.sflag [#allocation4], 1
    %20 = vsyncpa %s19, 0
    loop: start=0, step=1, limit=6
    $region2: #{clip_vision_forward.1} parent=1 // loop_pre_header
      _
    $region3: #{clip_vision_forward.1} parent=1 // loop_header
      %s22 = sphi 0, %s26
      %p23 = scmp.ge.s32.totalorder %s22, 6
      %s29 = sphi 0, %s41
      %s30 = sphi 0, %s37
      %s31 = sphi 0, %s29
      %s32 = sphi 0, %s30
      %s33 = sphi 0, %s31
      %s34 = sphi 0, %s32
      %s44 = sphi 0, %s46
      %s47 = sphi 0, %s44
      %s48 = sphi 0, %s47
      %s64 = sphi 0, %s48
      %s68 = sphi 0, %s68
      %s70 = sphi 0, %s68
      %s71 = sphi 0, %s70
      %s85 = sphi 0, %s71
      %s89 = sphi 0, %s89
      %s91 = sphi 0, %s89
      %s92 = sphi 0, %s91
      %s106 = sphi 0, %s92
      %s110 = sphi 0, %s110
      %s112 = sphi 0, %s110
      %s113 = sphi 0, %s112
      %s127 = sphi 0, %s113
      %s133 = sphi 0, %s135
      %s136 = sphi 0, %s133
      %s137 = sphi 0, %s136
      %s153 = sphi 0, %s137
      %s159 = sphi 0, %s161
      %s162 = sphi 0, %s159
      %s163 = sphi 0, %s162
      %s179 = sphi 0, %s163
      %s185 = sphi 0, %s187
      %s188 = sphi 0, %s185
      %s189 = sphi 0, %s188
      %s205 = sphi 0, %s189
      %s211 = sphi 0, %s213
      %s214 = sphi 0, %s211
      %s215 = sphi 0, %s214
      %s231 = sphi 0, %s215
      %s237 = sphi 0, %s239
      %s240 = sphi 0, %s237
      %s241 = sphi 0, %s240
      %s257 = sphi 0, %s241
      %s263 = sphi 0, %s265
      %s266 = sphi 0, %s263
      %s267 = sphi 0, %s266
      %s283 = sphi 0, %s267
      %s289 = sphi 0, %s291
      %s292 = sphi 0, %s289
      %s293 = sphi 0, %s292
      %s309 = sphi 0, %s293
      %s315 = sphi 0, %s317
      %s318 = sphi 0, %s315
      %s319 = sphi 0, %s318
      %s335 = sphi 0, %s319
      %s341 = sphi 0, %s343
      %s344 = sphi 0, %s341
      %s345 = sphi 0, %s344
      %s361 = sphi 0, %s345
      %s367 = sphi 0, %s369
      %s370 = sphi 0, %s367
      %s371 = sphi 0, %s370
      %s387 = sphi 0, %s371
    $region4: #{clip_vision_forward.1} parent=1 // loop_header_branch
      %25 = sbr.rel (%p23) target = $region8
    $region5: #{clip_vision_forward.1} parent=1 // loop_body
      %s27 = ssub.s32 %s22, 1
      %s28 = ssub.s32 %s22, 2
      %s35 = sadd.s32 1, %s30
      %p36 = scmp.ge.s32.totalorder %s35, 2
      %s37 = scalar_select %p36, 0, %s35
      %s38 = sadd.s32 1, %s29
      %s39 = scalar_select %p36, %s38, %s29
      %p40 = scmp.ge.s32.totalorder %s39, 2
      %s41 = scalar_select %p40, 0, %s39
      %s42 = ssub.s32 %s29, %s41
      %p43 = scmp.eq.s32.totalorder %s42, 0
      %s45 = sadd.s32 %s44, 1
      %s46 = scalar_select %p43, %s44, %s45
      %p49 = pneg %p43
      %p50 = scmp.eq.s32.totalorder %s22, 3
      %p51 = por %p49, %p50
      %p52 = scmp.ne.s32.totalorder %s44, %s47
      %p53 = scmp.eq.s32.totalorder %s22, 0
      %p54 = por %p52, %p53
      %p55 = scmp.ne.s32.totalorder %s44, %s47
      %p56 = scmp.eq.s32.totalorder %s27, 3
      %p57 = por %p55, %p56
      %p58 = scmp.ne.s32.totalorder %s47, %s48
      %p59 = scmp.eq.s32.totalorder %s27, 0
      %p60 = por %p58, %p59
      %p61 = scmp.ne.s32.totalorder %s47, %s48
      %p62 = scmp.eq.s32.totalorder %s28, 3
      %p63 = por %p61, %p62
      %p65 = scmp.ne.s32.totalorder %s48, %s64
      %p66 = scmp.eq.s32.totalorder %s28, 0
      %p67 = por %p65, %p66
      %s69 = sadd.s32 %s68, 1
      %p72 = scmp.eq.s32.totalorder %s22, 3
      %p73 = scmp.ne.s32.totalorder %s68, %s70
      %p74 = scmp.eq.s32.totalorder %s22, 0
      %p75 = por %p73, %p74
      %p76 = scmp.ne.s32.totalorder %s68, %s70
      %p77 = scmp.eq.s32.totalorder %s27, 3
      %p78 = por %p76, %p77
      %p79 = scmp.ne.s32.totalorder %s70, %s71
      %p80 = scmp.eq.s32.totalorder %s27, 0
      %p81 = por %p79, %p80
      %p82 = scmp.ne.s32.totalorder %s70, %s71
      %p83 = scmp.eq.s32.totalorder %s28, 3
      %p84 = por %p82, %p83
      %p86 = scmp.ne.s32.totalorder %s71, %s85
      %p87 = scmp.eq.s32.totalorder %s28, 0
      %p88 = por %p86, %p87
      %s90 = sadd.s32 %s89, 1
      %p93 = scmp.eq.s32.totalorder %s22, 3
      %p94 = scmp.ne.s32.totalorder %s89, %s91
      %p95 = scmp.eq.s32.totalorder %s22, 0
      %p96 = por %p94, %p95
      %p97 = scmp.ne.s32.totalorder %s89, %s91
      %p98 = scmp.eq.s32.totalorder %s27, 3
      %p99 = por %p97, %p98
      %p100 = scmp.ne.s32.totalorder %s91, %s92
      %p101 = scmp.eq.s32.totalorder %s27, 0
      %p102 = por %p100, %p101
      %p103 = scmp.ne.s32.totalorder %s91, %s92
      %p104 = scmp.eq.s32.totalorder %s28, 3
      %p105 = por %p103, %p104
      %p107 = scmp.ne.s32.totalorder %s92, %s106
      %p108 = scmp.eq.s32.totalorder %s28, 0
      %p109 = por %p107, %p108
      %s111 = sadd.s32 %s110, 1
      %p114 = scmp.eq.s32.totalorder %s22, 3
      %p115 = scmp.ne.s32.totalorder %s110, %s112
      %p116 = scmp.eq.s32.totalorder %s22, 0
      %p117 = por %p115, %p116
      %p118 = scmp.ne.s32.totalorder %s110, %s112
      %p119 = scmp.eq.s32.totalorder %s27, 3
      %p120 = por %p118, %p119
      %p121 = scmp.ne.s32.totalorder %s112, %s113
      %p122 = scmp.eq.s32.totalorder %s27, 0
      %p123 = por %p121, %p122
      %p124 = scmp.ne.s32.totalorder %s112, %s113
      %p125 = scmp.eq.s32.totalorder %s28, 3
      %p126 = por %p124, %p125
      %p128 = scmp.ne.s32.totalorder %s113, %s127
      %p129 = scmp.eq.s32.totalorder %s28, 0
      %p130 = por %p128, %p129
      %s131 = ssub.s32 %s30, %s37
      %p132 = scmp.eq.s32.totalorder %s131, 0
      %s134 = sadd.s32 %s133, 1
      %s135 = scalar_select %p132, %s133, %s134
      %p138 = pneg %p132
      %p139 = scmp.eq.s32.totalorder %s22, 3
      %p140 = por %p138, %p139
      %p141 = scmp.ne.s32.totalorder %s133, %s136
      %p142 = scmp.eq.s32.totalorder %s22, 0
      %p143 = por %p141, %p142
      %p144 = scmp.ne.s32.totalorder %s133, %s136
      %p145 = scmp.eq.s32.totalorder %s27, 3
      %p146 = por %p144, %p145
      %p147 = scmp.ne.s32.totalorder %s136, %s137
      %p148 = scmp.eq.s32.totalorder %s27, 0
      %p149 = por %p147, %p148
      %p150 = scmp.ne.s32.totalorder %s136, %s137
      %p151 = scmp.eq.s32.totalorder %s28, 3
      %p152 = por %p150, %p151
      %p154 = scmp.ne.s32.totalorder %s137, %s153
      %p155 = scmp.eq.s32.totalorder %s28, 0
      %p156 = por %p154, %p155
      %s157 = ssub.s32 %s30, %s37
      %p158 = scmp.eq.s32.totalorder %s157, 0
      %s160 = sadd.s32 %s159, 1
      %s161 = scalar_select %p158, %s159, %s160
      %p164 = pneg %p158
      %p165 = scmp.eq.s32.totalorder %s22, 3
      %p166 = por %p164, %p165
      %p167 = scmp.ne.s32.totalorder %s159, %s162
      %p168 = scmp.eq.s32.totalorder %s22, 0
      %p169 = por %p167, %p168
      %p170 = scmp.ne.s32.totalorder %s159, %s162
      %p171 = scmp.eq.s32.totalorder %s27, 3
      %p172 = por %p170, %p171
      %p173 = scmp.ne.s32.totalorder %s162, %s163
      %p174 = scmp.eq.s32.totalorder %s27, 0
      %p175 = por %p173, %p174
      %p176 = scmp.ne.s32.totalorder %s162, %s163
      %p177 = scmp.eq.s32.totalorder %s28, 3
      %p178 = por %p176, %p177
      %p180 = scmp.ne.s32.totalorder %s163, %s179
      %p181 = scmp.eq.s32.totalorder %s28, 0
      %p182 = por %p180, %p181
      %s183 = ssub.s32 %s30, %s37
      %p184 = scmp.eq.s32.totalorder %s183, 0
      %s186 = sadd.s32 %s185, 1
      %s187 = scalar_select %p184, %s185, %s186
      %p190 = pneg %p184
      %p191 = scmp.eq.s32.totalorder %s22, 3
      %p192 = por %p190, %p191
      %p193 = scmp.ne.s32.totalorder %s185, %s188
      %p194 = scmp.eq.s32.totalorder %s22, 0
      %p195 = por %p193, %p194
      %p196 = scmp.ne.s32.totalorder %s185, %s188
      %p197 = scmp.eq.s32.totalorder %s27, 3
      %p198 = por %p196, %p197
      %p199 = scmp.ne.s32.totalorder %s188, %s189
      %p200 = scmp.eq.s32.totalorder %s27, 0
      %p201 = por %p199, %p200
      %p202 = scmp.ne.s32.totalorder %s188, %s189
      %p203 = scmp.eq.s32.totalorder %s28, 3
      %p204 = por %p202, %p203
      %p206 = scmp.ne.s32.totalorder %s189, %s205
      %p207 = scmp.eq.s32.totalorder %s28, 0
      %p208 = por %p206, %p207
      %s209 = ssub.s32 %s30, %s37
      %p210 = scmp.eq.s32.totalorder %s209, 0
      %s212 = sadd.s32 %s211, 1
      %s213 = scalar_select %p210, %s211, %s212
      %p216 = pneg %p210
      %p217 = scmp.eq.s32.totalorder %s22, 3
      %p218 = por %p216, %p217
      %p219 = scmp.ne.s32.totalorder %s211, %s214
      %p220 = scmp.eq.s32.totalorder %s22, 0
      %p221 = por %p219, %p220
      %p222 = scmp.ne.s32.totalorder %s211, %s214
      %p223 = scmp.eq.s32.totalorder %s27, 3
      %p224 = por %p222, %p223
      %p225 = scmp.ne.s32.totalorder %s214, %s215
      %p226 = scmp.eq.s32.totalorder %s27, 0
      %p227 = por %p225, %p226
      %p228 = scmp.ne.s32.totalorder %s214, %s215
      %p229 = scmp.eq.s32.totalorder %s28, 3
      %p230 = por %p228, %p229
      %p232 = scmp.ne.s32.totalorder %s215, %s231
      %p233 = scmp.eq.s32.totalorder %s28, 0
      %p234 = por %p232, %p233
      %s235 = ssub.s32 %s30, %s37
      %p236 = scmp.eq.s32.totalorder %s235, 0
      %s238 = sadd.s32 %s237, 1
      %s239 = scalar_select %p236, %s237, %s238
      %p242 = pneg %p236
      %p243 = scmp.eq.s32.totalorder %s22, 3
      %p244 = por %p242, %p243
      %p245 = scmp.ne.s32.totalorder %s237, %s240
      %p246 = scmp.eq.s32.totalorder %s22, 0
      %p247 = por %p245, %p246
      %p248 = scmp.ne.s32.totalorder %s237, %s240
      %p249 = scmp.eq.s32.totalorder %s27, 3
      %p250 = por %p248, %p249
      %p251 = scmp.ne.s32.totalorder %s240, %s241
      %p252 = scmp.eq.s32.totalorder %s27, 0
      %p253 = por %p251, %p252
      %p254 = scmp.ne.s32.totalorder %s240, %s241
      %p255 = scmp.eq.s32.totalorder %s28, 3
      %p256 = por %p254, %p255
      %p258 = scmp.ne.s32.totalorder %s241, %s257
      %p259 = scmp.eq.s32.totalorder %s28, 0
      %p260 = por %p258, %p259
      %s261 = ssub.s32 %s30, %s37
      %p262 = scmp.eq.s32.totalorder %s261, 0
      %s264 = sadd.s32 %s263, 1
      %s265 = scalar_select %p262, %s263, %s264
      %p268 = pneg %p262
      %p269 = scmp.eq.s32.totalorder %s22, 3
      %p270 = por %p268, %p269
      %p271 = scmp.ne.s32.totalorder %s263, %s266
      %p272 = scmp.eq.s32.totalorder %s22, 0
      %p273 = por %p271, %p272
      %p274 = scmp.ne.s32.totalorder %s263, %s266
      %p275 = scmp.eq.s32.totalorder %s27, 3
      %p276 = por %p274, %p275
      %p277 = scmp.ne.s32.totalorder %s266, %s267
      %p278 = scmp.eq.s32.totalorder %s27, 0
      %p279 = por %p277, %p278
      %p280 = scmp.ne.s32.totalorder %s266, %s267
      %p281 = scmp.eq.s32.totalorder %s28, 3
      %p282 = por %p280, %p281
      %p284 = scmp.ne.s32.totalorder %s267, %s283
      %p285 = scmp.eq.s32.totalorder %s28, 0
      %p286 = por %p284, %p285
      %s287 = ssub.s32 %s30, %s37
      %p288 = scmp.eq.s32.totalorder %s287, 0
      %s290 = sadd.s32 %s289, 1
      %s291 = scalar_select %p288, %s289, %s290
      %p294 = pneg %p288
      %p295 = scmp.eq.s32.totalorder %s22, 3
      %p296 = por %p294, %p295
      %p297 = scmp.ne.s32.totalorder %s289, %s292
      %p298 = scmp.eq.s32.totalorder %s22, 0
      %p299 = por %p297, %p298
      %p300 = scmp.ne.s32.totalorder %s289, %s292
      %p301 = scmp.eq.s32.totalorder %s27, 3
      %p302 = por %p300, %p301
      %p303 = scmp.ne.s32.totalorder %s292, %s293
      %p304 = scmp.eq.s32.totalorder %s27, 0
      %p305 = por %p303, %p304
      %p306 = scmp.ne.s32.totalorder %s292, %s293
      %p307 = scmp.eq.s32.totalorder %s28, 3
      %p308 = por %p306, %p307
      %p310 = scmp.ne.s32.totalorder %s293, %s309
      %p311 = scmp.eq.s32.totalorder %s28, 0
      %p312 = por %p310, %p311
      %s313 = ssub.s32 %s30, %s37
      %p314 = scmp.eq.s32.totalorder %s313, 0
      %s316 = sadd.s32 %s315, 1
      %s317 = scalar_select %p314, %s315, %s316
      %p320 = pneg %p314
      %p321 = scmp.eq.s32.totalorder %s22, 3
      %p322 = por %p320, %p321
      %p323 = scmp.ne.s32.totalorder %s315, %s318
      %p324 = scmp.eq.s32.totalorder %s22, 0
      %p325 = por %p323, %p324
      %p326 = scmp.ne.s32.totalorder %s315, %s318
      %p327 = scmp.eq.s32.totalorder %s27, 3
      %p328 = por %p326, %p327
      %p329 = scmp.ne.s32.totalorder %s318, %s319
      %p330 = scmp.eq.s32.totalorder %s27, 0
      %p331 = por %p329, %p330
      %p332 = scmp.ne.s32.totalorder %s318, %s319
      %p333 = scmp.eq.s32.totalorder %s28, 3
      %p334 = por %p332, %p333
      %p336 = scmp.ne.s32.totalorder %s319, %s335
      %p337 = scmp.eq.s32.totalorder %s28, 0
      %p338 = por %p336, %p337
      %s339 = ssub.s32 %s30, %s37
      %p340 = scmp.eq.s32.totalorder %s339, 0
      %s342 = sadd.s32 %s341, 1
      %s343 = scalar_select %p340, %s341, %s342
      %p346 = pneg %p340
      %p347 = scmp.eq.s32.totalorder %s22, 3
      %p348 = por %p346, %p347
      %p349 = scmp.ne.s32.totalorder %s341, %s344
      %p350 = scmp.eq.s32.totalorder %s22, 0
      %p351 = por %p349, %p350
      %p352 = scmp.ne.s32.totalorder %s341, %s344
      %p353 = scmp.eq.s32.totalorder %s27, 3
      %p354 = por %p352, %p353
      %p355 = scmp.ne.s32.totalorder %s344, %s345
      %p356 = scmp.eq.s32.totalorder %s27, 0
      %p357 = por %p355, %p356
      %p358 = scmp.ne.s32.totalorder %s344, %s345
      %p359 = scmp.eq.s32.totalorder %s28, 3
      %p360 = por %p358, %p359
      %p362 = scmp.ne.s32.totalorder %s345, %s361
      %p363 = scmp.eq.s32.totalorder %s28, 0
      %p364 = por %p362, %p363
      %s365 = ssub.s32 %s29, %s41
      %p366 = scmp.eq.s32.totalorder %s365, 0
      %s368 = sadd.s32 %s367, 1
      %s369 = scalar_select %p366, %s367, %s368
      %p372 = pneg %p366
      %p373 = scmp.eq.s32.totalorder %s22, 3
      %p374 = por %p372, %p373
      %p375 = scmp.ne.s32.totalorder %s367, %s370
      %p376 = scmp.eq.s32.totalorder %s22, 0
      %p377 = por %p375, %p376
      %p378 = scmp.ne.s32.totalorder %s367, %s370
      %p379 = scmp.eq.s32.totalorder %s27, 3
      %p380 = por %p378, %p379
      %p381 = scmp.ne.s32.totalorder %s370, %s371
      %p382 = scmp.eq.s32.totalorder %s27, 0
      %p383 = por %p381, %p382
      %p384 = scmp.ne.s32.totalorder %s370, %s371
      %p385 = scmp.eq.s32.totalorder %s28, 3
      %p386 = por %p384, %p385
      %p388 = scmp.ne.s32.totalorder %s371, %s387
      %p389 = scmp.eq.s32.totalorder %s28, 0
      %p390 = por %p388, %p389
      %p391 = scmp.le.s32.totalorder 1, %s22
      %p392 = scmp.lt.s32.totalorder %s22, 5
      %p393 = pnand %p391, %p392
      %p394 = pneg %p393
      // Predicated region
      $region9: #{clip_vision_forward.1} parent=5 // pred_check
        _
      $region10: #{clip_vision_forward.1} parent=5 // pred_check_branch
        %396 = sbr.rel (%p393) target = $region12
      $region11: #{clip_vision_forward.1} parent=5 // pred_region
        %s397 = ssub.s32 %s22, 1
        // Predicated region
        $region13: #{clip_vision_forward.1} parent=11 // pred_check
          %p398 = pneg %p81
        $region14: #{clip_vision_forward.1} parent=11 // pred_check_branch
          %400 = sbr.rel (%p398) target = $region16
        $region15: #{clip_vision_forward.1} parent=11 // pred_region
          _
        $region16: #{clip_vision_forward.1} parent=11 // pred_fallthru
          _
        // Predicated region
        $region17: #{clip_vision_forward.1} parent=11 // pred_check
          %p401 = pneg %p102
        $region18: #{clip_vision_forward.1} parent=11 // pred_check_branch
          %403 = sbr.rel (%p401) target = $region20
        $region19: #{clip_vision_forward.1} parent=11 // pred_region
          _
        $region20: #{clip_vision_forward.1} parent=11 // pred_fallthru
          _
        // Predicated region
        $region21: #{clip_vision_forward.1} parent=11 // pred_check
          %p404 = pneg %p123
        $region22: #{clip_vision_forward.1} parent=11 // pred_check_branch
          %406 = sbr.rel (%p404) target = $region24
        $region23: #{clip_vision_forward.1} parent=11 // pred_region
          _
        $region24: #{clip_vision_forward.1} parent=11 // pred_fallthru
          _
      $region12: #{clip_vision_forward.1} parent=5 // pred_fallthru
        _
      %p407 = scmp.lt.s32.totalorder %s22, 4
      // Predicated region
      $region25: #{clip_vision_forward.1} parent=5 // pred_check
        %p408 = pneg %p407
      $region26: #{clip_vision_forward.1} parent=5 // pred_check_branch
        %410 = sbr.rel (%p408) target = $region28
      $region27: #{clip_vision_forward.1} parent=5 // pred_region
        // Predicated region
        $region29: #{clip_vision_forward.1} parent=27 // pred_check
          %p411 = pneg %p54
        $region30: #{clip_vision_forward.1} parent=27 // pred_check_branch
          %413 = sbr.rel (%p411) target = $region32
        $region31: #{clip_vision_forward.1} parent=27 // pred_region
          %p414 = scmp.lt.s32.totalorder %s29, 1
          %s415 = scalar_select %p414, %s29, 1
          %s416 = smul.addr %s415, 2
          %s417 = smul.addr %s416, 4
          %s418 = scalar_lea.vmem %s0, %s417
        $region32: #{clip_vision_forward.1} parent=27 // pred_fallthru
          _
        // Predicated region
        $region33: #{clip_vision_forward.1} parent=27 // pred_check
          %p419 = pneg %p143
        $region34: #{clip_vision_forward.1} parent=27 // pred_check_branch
          %421 = sbr.rel (%p419) target = $region36
        $region35: #{clip_vision_forward.1} parent=27 // pred_region
          %p422 = scmp.lt.s32.totalorder %s30, 1
          %s423 = scalar_select %p422, %s30, 1
          %s424 = smul.addr %s423, 4
          %s425 = scalar_lea.vmem %s4, %s424
        $region36: #{clip_vision_forward.1} parent=27 // pred_fallthru
          _
        // Predicated region
        $region37: #{clip_vision_forward.1} parent=27 // pred_check
          %p426 = pneg %p169
        $region38: #{clip_vision_forward.1} parent=27 // pred_check_branch
          %428 = sbr.rel (%p426) target = $region40
        $region39: #{clip_vision_forward.1} parent=27 // pred_region
          %p429 = scmp.lt.s32.totalorder %s30, 1
          %s430 = scalar_select %p429, %s30, 1
          %s431 = smul.addr %s430, 12
          %s432 = smul.addr %s431, 4
          %s433 = scalar_lea.vmem %s5, %s432
        $region40: #{clip_vision_forward.1} parent=27 // pred_fallthru
          _
        // Predicated region
        $region41: #{clip_vision_forward.1} parent=27 // pred_check
          %p434 = pneg %p195
        $region42: #{clip_vision_forward.1} parent=27 // pred_check_branch
          %436 = sbr.rel (%p434) target = $region44
        $region43: #{clip_vision_forward.1} parent=27 // pred_region
          %p437 = scmp.lt.s32.totalorder %s30, 1
          %s438 = scalar_select %p437, %s30, 1
          %s439 = smul.addr %s438, 3
          %s440 = scalar_lea.vmem %s6, %s439
        $region44: #{clip_vision_forward.1} parent=27 // pred_fallthru
          _
        // Predicated region
        $region45: #{clip_vision_forward.1} parent=27 // pred_check
          %p441 = pneg %p221
        $region46: #{clip_vision_forward.1} parent=27 // pred_check_branch
          %443 = sbr.rel (%p441) target = $region48
        $region47: #{clip_vision_forward.1} parent=27 // pred_region
          %p444 = scmp.lt.s32.totalorder %s30, 1
          %s445 = scalar_select %p444, %s30, 1
          %s446 = smul.addr %s445, 4
          %s447 = smul.addr %s446, 4
          %s448 = scalar_lea.vmem %s7, %s447
        $region48: #{clip_vision_forward.1} parent=27 // pred_fallthru
          _
        // Predicated region
        $region49: #{clip_vision_forward.1} parent=27 // pred_check
          %p449 = pneg %p247
        $region50: #{clip_vision_forward.1} parent=27 // pred_check_branch
          %451 = sbr.rel (%p449) target = $region52
        $region51: #{clip_vision_forward.1} parent=27 // pred_region
          %p452 = scmp.lt.s32.totalorder %s30, 1
          %s453 = scalar_select %p452, %s30, 1
          %s454 = scalar_lea.vmem %s8, %s453
        $region52: #{clip_vision_forward.1} parent=27 // pred_fallthru
          _
        // Predicated region
        $region53: #{clip_vision_forward.1} parent=27 // pred_check
          %p455 = pneg %p273
        $region54: #{clip_vision_forward.1} parent=27 // pred_check_branch
          %457 = sbr.rel (%p455) target = $region56
        $region55: #{clip_vision_forward.1} parent=27 // pred_region
          %p458 = scmp.lt.s32.totalorder %s30, 1
          %s459 = scalar_select %p458, %s30, 1
          %s460 = smul.addr %s459, 4
          %s461 = smul.addr %s460, 4
          %s462 = scalar_lea.vmem %s9, %s461
        $region56: #{clip_vision_forward.1} parent=27 // pred_fallthru
          _
        // Predicated region
        $region57: #{clip_vision_forward.1} parent=27 // pred_check
          %p463 = pneg %p299
        $region58: #{clip_vision_forward.1} parent=27 // pred_check_branch
          %465 = sbr.rel (%p463) target = $region60
        $region59: #{clip_vision_forward.1} parent=27 // pred_region
          %p466 = scmp.lt.s32.totalorder %s30, 1
          %s467 = scalar_select %p466, %s30, 1
          %s468 = scalar_lea.vmem %s10, %s467
        $region60: #{clip_vision_forward.1} parent=27 // pred_fallthru
          _
        // Predicated region
        $region61: #{clip_vision_forward.1} parent=27 // pred_check
          %p469 = pneg %p325
        $region62: #{clip_vision_forward.1} parent=27 // pred_check_branch
          %471 = sbr.rel (%p469) target = $region64
        $region63: #{clip_vision_forward.1} parent=27 // pred_region
          %p472 = scmp.lt.s32.totalorder %s30, 1
          %s473 = scalar_select %p472, %s30, 1
          %s474 = smul.addr %s473, 8
          %s475 = smul.addr %s474, 4
          %s476 = scalar_lea.vmem %s11, %s475
        $region64: #{clip_vision_forward.1} parent=27 // pred_fallthru
          _
        // Predicated region
        $region65: #{clip_vision_forward.1} parent=27 // pred_check
          %p477 = pneg %p351
        $region66: #{clip_vision_forward.1} parent=27 // pred_check_branch
          %479 = sbr.rel (%p477) target = $region68
        $region67: #{clip_vision_forward.1} parent=27 // pred_region
          %p480 = scmp.lt.s32.totalorder %s30, 1
          %s481 = scalar_select %p480, %s30, 1
          %s482 = scalar_lea.vmem %s12, %s481
        $region68: #{clip_vision_forward.1} parent=27 // pred_fallthru
          _
      $region28: #{clip_vision_forward.1} parent=5 // pred_fallthru
        _
      %p483 = scmp.le.s32.totalorder 1, %s22
      %p484 = scmp.lt.s32.totalorder %s22, 5
      %p485 = pnand %p483, %p484
      %p486 = pneg %p485
      // Predicated region
      $region69: #{clip_vision_forward.1} parent=5 // pred_check
        _
      $region70: #{clip_vision_forward.1} parent=5 // pred_check_branch
        %488 = sbr.rel (%p485) target = $region72
      $region71: #{clip_vision_forward.1} parent=5 // pred_region
        %s489 = ssub.s32 %s22, 1
        %p490 = scmp.lt.s32.totalorder %s31, 1
        %s491 = scalar_select %p490, %s31, 1
        %s492 = smul.addr %s491, 2
        %s493 = smul.addr %s492, 4
        %s494 = scalar_lea.vmem %s0, %s493
        %p495 = pneg %p60
        %p496 = pneg %p57
        %p497 = pneg %p81
        %p498 = pneg %p78
        %p499 = pneg %p102
        %p500 = pneg %p99
        %p501 = pneg %p123
        %p502 = pneg %p120
        %p503 = scmp.lt.s32.totalorder %s32, 1
        %s504 = scalar_select %p503, %s32, 1
        %s505 = smul.addr %s504, 4
        %s506 = scalar_lea.vmem %s4, %s505
        %p507 = pneg %p149
        %p508 = pneg %p146
        %p509 = scmp.lt.s32.totalorder %s32, 1
        %s510 = scalar_select %p509, %s32, 1
        %s511 = smul.addr %s510, 12
        %s512 = smul.addr %s511, 4
        %s513 = scalar_lea.vmem %s5, %s512
        %p514 = pneg %p175
        %p515 = pneg %p172
        %p516 = scmp.lt.s32.totalorder %s32, 1
        %s517 = scalar_select %p516, %s32, 1
        %s518 = smul.addr %s517, 3
        %s519 = scalar_lea.vmem %s6, %s518
        %p520 = pneg %p201
        %p521 = pneg %p198
        %p522 = scmp.lt.s32.totalorder %s32, 1
        %s523 = scalar_select %p522, %s32, 1
        %s524 = smul.addr %s523, 4
        %s525 = smul.addr %s524, 4
        %s526 = scalar_lea.vmem %s7, %s525
        %p527 = pneg %p227
        %p528 = pneg %p224
        %p529 = scmp.lt.s32.totalorder %s32, 1
        %s530 = scalar_select %p529, %s32, 1
        %s531 = scalar_lea.vmem %s8, %s530
        %p532 = pneg %p253
        %p533 = pneg %p250
        %p534 = scmp.lt.s32.totalorder %s32, 1
        %s535 = scalar_select %p534, %s32, 1
        %s536 = smul.addr %s535, 4
        %s537 = smul.addr %s536, 4
        %s538 = scalar_lea.vmem %s9, %s537
        %p539 = pneg %p279
        %p540 = pneg %p276
        %p541 = scmp.lt.s32.totalorder %s32, 1
        %s542 = scalar_select %p541, %s32, 1
        %s543 = scalar_lea.vmem %s10, %s542
        %p544 = pneg %p305
        %p545 = pneg %p302
        %p546 = scmp.lt.s32.totalorder %s32, 1
        %s547 = scalar_select %p546, %s32, 1
        %s548 = smul.addr %s547, 8
        %s549 = smul.addr %s548, 4
        %s550 = scalar_lea.vmem %s11, %s549
        %p551 = pneg %p331
        %p552 = pneg %p328
        %p553 = scmp.lt.s32.totalorder %s32, 1
        %s554 = scalar_select %p553, %s32, 1
        %s555 = scalar_lea.vmem %s12, %s554
        %p556 = pneg %p357
        %p557 = pneg %p354
        %p558 = pneg %p383
        %p559 = pneg %p380
        %s560 = sand.u32 %s370, 1
        %s561 = scalar_lea.sflag [#allocation4], %s560
        %s562 = sand.u32 %s370, 1
        %s563 = scalar_lea.vmem [#allocation3], %s562
        %p564 = scmp.lt.s32.totalorder %s31, 1
        %s565 = scalar_select %p564, %s31, 1
        %s566 = smul.addr %s565, 2
        %s567 = smul.addr %s566, 4
        %s568 = scalar_lea.vmem %s0, %s567
        %p569 = scmp.lt.s32.totalorder %s32, 1
        %s570 = scalar_select %p569, %s32, 1
        %s571 = smul.addr %s570, 4
        %s572 = scalar_lea.vmem %s4, %s571
        %p573 = scmp.lt.s32.totalorder %s32, 1
        %s574 = scalar_select %p573, %s32, 1
        %s575 = smul.addr %s574, 12
        %s576 = smul.addr %s575, 4
        %s577 = scalar_lea.vmem %s5, %s576
        %p578 = scmp.lt.s32.totalorder %s32, 1
        %s579 = scalar_select %p578, %s32, 1
        %s580 = smul.addr %s579, 3
        %s581 = scalar_lea.vmem %s6, %s580
        %p582 = scmp.lt.s32.totalorder %s32, 1
        %s583 = scalar_select %p582, %s32, 1
        %s584 = smul.addr %s583, 4
        %s585 = smul.addr %s584, 4
        %s586 = scalar_lea.vmem %s7, %s585
        %p587 = scmp.lt.s32.totalorder %s32, 1
        %s588 = scalar_select %p587, %s32, 1
        %s589 = scalar_lea.vmem %s8, %s588
        %p590 = scmp.lt.s32.totalorder %s32, 1
        %s591 = scalar_select %p590, %s32, 1
        %s592 = smul.addr %s591, 4
        %s593 = smul.addr %s592, 4
        %s594 = scalar_lea.vmem %s9, %s593
        %p595 = scmp.lt.s32.totalorder %s32, 1
        %s596 = scalar_select %p595, %s32, 1
        %s597 = scalar_lea.vmem %s10, %s596
        %p598 = scmp.lt.s32.totalorder %s32, 1
        %s599 = scalar_select %p598, %s32, 1
        %s600 = smul.addr %s599, 8
        %s601 = smul.addr %s600, 4
        %s602 = scalar_lea.vmem %s11, %s601
        %p603 = scmp.lt.s32.totalorder %s32, 1
        %s604 = scalar_select %p603, %s32, 1
        %s605 = scalar_lea.vmem %s12, %s604
        %v607 = vld [vmem:[%s3] sm:$0xf]
        %p608 = scmp.eq.s32.totalorder %s32, 0
        // Predicated region
        $region73: #{clip_vision_forward.1} parent=71 // pred_check
          %p609 = pneg %p608
        $region74: #{clip_vision_forward.1} parent=71 // pred_check_branch
          %611 = sbr.rel (%p609) target = $region76
        $region75: #{clip_vision_forward.1} parent=71 // pred_region
          %v612 = vld [vmem:[%s568] sm:$0x77]
          %v613 = vld [vmem:[%s1] sm:$0xf]
          %v614 = vld [vmem:[%s1 + $0x4] sm:$0xf]
          %v615 = vld [vmem:[%s1 + $0x8] sm:$0xf]
          %v616 = vld [vmem:[%s1 + $0xc] sm:$0xf]
          %v617 = vld [vmem:[%s1 + $0x10] sm:$0xf]
          %v618 = vld [vmem:[%s1 + $0x14] sm:$0xf]
          %v619 = vld [vmem:[%s1 + $0x18] sm:$0xf]
          %v620 = vld [vmem:[%s1 + $0x1c] sm:$0xf]
          %v621 = vld [vmem:[%s1 + $0x20] sm:$0xf]
          %v622 = vld [vmem:[%s1 + $0x24] sm:$0xf]
          %v623 = vld [vmem:[%s1 + $0x28] sm:$0xf]
          %v624 = vld [vmem:[%s1 + $0x2c] sm:$0xf]
          %v625 = vld [vmem:[%s1 + $0x30] sm:$0xf]
          %v626 = vld [vmem:[%s1 + $0x34] sm:$0xf]
          %v627 = vld [vmem:[%s1 + $0x38] sm:$0xf]
          %v628 = vld [vmem:[%s1 + $0x3c] sm:$0xf]
          %v629 = vld [vmem:[%s1 + $0x40] sm:$0xf]
          %v630 = vld [vmem:[%s1 + $0x44] sm:$0xf]
          %v631 = vld [vmem:[%s1 + $0x48] sm:$0xf]
          %v632 = vld [vmem:[%s1 + $0x4c] sm:$0xf]
          %v633 = vld [vmem:[%s1 + $0x50] sm:$0xf]
          %v634 = vld [vmem:[%s1 + $0x54] sm:$0xf]
          %v635 = vld [vmem:[%s1 + $0x58] sm:$0xf]
          %v636 = vld [vmem:[%s1 + $0x5c] sm:$0xf]
          %v637 = vld [vmem:[%s2] sm:$0x1f]
          %v639 = vunpack.c.l.b16 %v612
          %v640 = vunpack.c.h.b16 %v612
          %v641 = vpack.c.b16 %v639, %v639
          %v642 = vpack.c.b16 %v640, %v640
          %v668 = vunpack.c.l.b16 %v613
          %v669 = vunpack.c.l.b16 %v614
          %v670 = vunpack.c.l.b16 %v615
          %v671 = vunpack.c.l.b16 %v616
          %v672 = vunpack.c.l.b16 %v617
          %v673 = vunpack.c.l.b16 %v618
          %v674 = vunpack.c.l.b16 %v619
          %v675 = vunpack.c.l.b16 %v620
          %v676 = vunpack.c.l.b16 %v621
          %v677 = vunpack.c.l.b16 %v622
          %v678 = vunpack.c.l.b16 %v623
          %v679 = vunpack.c.l.b16 %v624
          %v680 = vunpack.c.l.b16 %v625
          %v681 = vunpack.c.l.b16 %v626
          %v682 = vunpack.c.l.b16 %v627
          %v683 = vunpack.c.l.b16 %v628
          %v684 = vunpack.c.l.b16 %v629
          %v685 = vunpack.c.l.b16 %v630
          %v686 = vunpack.c.l.b16 %v631
          %v687 = vunpack.c.l.b16 %v632
          %v688 = vunpack.c.l.b16 %v633
          %v689 = vunpack.c.l.b16 %v634
          %v690 = vunpack.c.l.b16 %v635
          %v691 = vunpack.c.l.b16 %v636
          %v692 = vpack.c.b16 %v669, %v668
          %v693 = vpack.c.b16 %v671, %v670
          %v694 = vpack.c.b16 %v673, %v672
          %v695 = vpack.c.b16 %v675, %v674
          %v696 = vpack.c.b16 %v677, %v676
          %v697 = vpack.c.b16 %v679, %v678
          %v698 = vpack.c.b16 %v681, %v680
          %v699 = vpack.c.b16 %v683, %v682
          %v700 = vpack.c.b16 %v685, %v684
          %v701 = vpack.c.b16 %v687, %v686
          %v702 = vpack.c.b16 %v689, %v688
          %v703 = vpack.c.b16 %v691, %v690
          %vm716 = vcmask 523264
          %v718 = vsel %vm716, %v642, 0
          %720 = vmatprep.subr.bf16.mxu0 0
          %721 = vmatpush1.bf16.msra.mxu0 %v692
          %722 = vmatprep.subr.bf16.mxu0 0
          %723 = vmatpush1.bf16.msra.mxu0 %v693
          %724 = vmatprep.subr.bf16.mxu0 0
          %725 = vmatpush1.bf16.msra.mxu0 %v694
          %726 = vmatprep.subr.bf16.mxu0 0
          %727 = vmatpush1.bf16.msra.mxu0 %v695
          %728 = vmatprep.subr.bf16.mxu0 0
          %729 = vmatpush1.bf16.msra.mxu0 %v696
          %730 = vmatprep.subr.bf16.mxu0 0
          %731 = vmatpush1.bf16.msra.mxu0 %v697
          %732 = vmatprep.subr.bf16.mxu0 0
          %733 = vmatpush1.bf16.msra.mxu0 %v698
          %734 = vmatprep.subr.bf16.mxu0 0
          %735 = vmatpush1.bf16.msra.mxu0 %v699
          %736 = vmatprep.subr.bf16.mxu0 0
          %737 = vmatpush1.bf16.msra.mxu0 %v700
          %738 = vmatprep.subr.bf16.mxu0 0
          %739 = vmatpush1.bf16.msra.mxu0 %v701
          %740 = vmatprep.subr.bf16.mxu0 0
          %741 = vmatpush1.bf16.msra.mxu0 %v702
          %742 = vmatprep.subr.bf16.mxu0 0
          %743 = vmatpush1.bf16.msra.mxu0 %v703
          %744 = vmatprep.subr.bf16.mxu0 0
          %745 = vmatpush1.bf16.msra.mxu0 0
          %746 = vmatprep.subr.bf16.mxu0 0
          %747 = vmatpush1.bf16.msra.mxu0 0
          %748 = vmatprep.subr.bf16.mxu0 0
          %749 = vmatpush1.bf16.msra.mxu0 0
          %750 = vmatprep.subr.bf16.mxu0 0
          %751 = vmatpush1.bf16.msra.mxu0 0
          %752 = vmatprep.mubr.bf16.mxu0 %v718
          %753 = vmatmul.mubr.bf16.gmra.mrb[0].mxu0 %v641
          %v754 = vpop.f32.mrb[0].mxu0
          %v755 = vadd.f32 %v637, %v754
          %v756 = vpop.f32.mrb[0].mxu0
          %v757 = vpop.f32.mrb[0].mxu0
          %v758 = vpop.f32.mrb[0].mxu0
          %759 = vdwg.mxu0
          %vm760 = vcmask 258048
          %v761 = vsel %vm760, %v755, 0.0
          %762 = vadd.xlane.f32.xlu0 %v761
          %v763 = vpop.xlane.xlu0 %762
          %v764 = vrcp.pop 32.0
          %v765 = vmul.f32 %v763, %v764
          %v766 = vsub.f32 %v755, %v765
          %v767 = vmul.f32 %v766, %v766
          %v768 = vsel %vm760, %v767, 0.0
          %769 = vadd.xlane.f32.xlu0 %v768
          %v770 = vpop.xlane.xlu0 %769
          %v771 = vmul.f32 %v770, %v764
          %v772 = vadd.f32 %v771, 1e-05
          %v773 = vrsqrt.pop %v772
          %v774 = vmul.f32 %v766, %v773
          %v775 = vlaneseq
          %v776 = vshrl.u32 %v775, 7
          %v777 = vsub.s32 0, %v776
          %v778 = vrot.slane %v607, %v777
          %v779 = vmul.f32 %v774, %v778
          %v780 = vlaneseq
          %v781 = vshrl.u32 %v780, 7
          %v782 = vsub.s32 1, %v781
          %v783 = vrot.slane %v607, %v782
          %v784 = vadd.f32 %v779, %v783
          %785 = vst.msk [vmem:[#allocation2] sm:$0x1f] %vm760, %v784
        $region76: #{clip_vision_forward.1} parent=71 // pred_fallthru
          _
        %v786 = vld [vmem:[#allocation2] sm:$0x1f]
        %v787 = vld [vmem:[%s572] sm:$0xf]
        %vm788 = vcmask 258048
        %v789 = vsel %vm788, %v786, 0.0
        %790 = vadd.xlane.f32.xlu0 %v789
        %v791 = vpop.xlane.xlu0 %790
        %v792 = vrcp.pop 32.0
        %v793 = vmul.f32 %v791, %v792
        %v794 = vsub.f32 %v786, %v793
        %v795 = vmul.f32 %v794, %v794
        %v796 = vsel %vm788, %v795, 0.0
        %797 = vadd.xlane.f32.xlu0 %v796
        %v798 = vpop.xlane.xlu0 %797
        %v799 = vmul.f32 %v798, %v792
        %v800 = vadd.f32 %v799, 1e-05
        %v801 = vrsqrt.pop %v800
        %v802 = vmul.f32 %v794, %v801
        %v803 = vlaneseq
        %v804 = vshrl.u32 %v803, 7
        %v805 = vsub.s32 0, %v804
        %v806 = vrot.slane %v787, %v805
        %v807 = vmul.f32 %v802, %v806
        %v808 = vlaneseq
        %v809 = vshrl.u32 %v808, 7
        %v810 = vsub.s32 1, %v809
        %v811 = vrot.slane %v787, %v810
        %v812 = vadd.f32 %v807, %v811
        %v813 = vpack.c.bf16 %v812, %v812
        %v814 = vld [vmem:[%s577] sm:$0xf]
        %v815 = vld [vmem:[%s577 + $0x4] sm:$0xf]
        %v816 = vld [vmem:[%s577 + $0x8] sm:$0xf]
        %v817 = vld [vmem:[%s577 + $0xc] sm:$0xf]
        %v818 = vld [vmem:[%s581] sm:$0x1]
        %v820 = vlaneseq
        %v821 = vshrl.u32 %v820, 7
        %v822 = vsub.s32 0, %v821
        %v823 = vrot.slane %v818, %v822
        %v829 = vunpack.c.l.b16 %v814
        %v830 = vunpack.c.l.b16 %v815
        %v831 = vunpack.c.l.b16 %v816
        %v832 = vunpack.c.l.b16 %v817
        %v833 = vpack.c.b16 %v830, %v829
        %v834 = vpack.c.b16 %v832, %v831
        %vm837 = vcmask 261120
        %v839 = vsel %vm837, %v813, 0
        %841 = vmatprep.subr.bf16.mxu0 0
        %842 = vmatpush1.bf16.msra.mxu0 %v833
        %843 = vmatprep.subr.bf16.mxu0 0
        %844 = vmatpush1.bf16.msra.mxu0 %v834
        %845 = vmatprep.subr.bf16.mxu0 0
        %846 = vmatpush1.bf16.msra.mxu0 0
        %847 = vmatprep.subr.bf16.mxu0 0
        %848 = vmatpush1.bf16.msra.mxu0 0
        %849 = vmatprep.subr.bf16.mxu0 0
        %850 = vmatpush1.bf16.msra.mxu0 0
        %851 = vmatprep.subr.bf16.mxu0 0
        %852 = vmatpush1.bf16.msra.mxu0 0
        %853 = vmatprep.subr.bf16.mxu0 0
        %854 = vmatpush1.bf16.msra.mxu0 0
        %855 = vmatprep.subr.bf16.mxu0 0
        %856 = vmatpush1.bf16.msra.mxu0 0
        %857 = vmatprep.subr.bf16.mxu0 0
        %858 = vmatpush1.bf16.msra.mxu0 0
        %859 = vmatprep.subr.bf16.mxu0 0
        %860 = vmatpush1.bf16.msra.mxu0 0
        %861 = vmatprep.subr.bf16.mxu0 0
        %862 = vmatpush1.bf16.msra.mxu0 0
        %863 = vmatprep.subr.bf16.mxu0 0
        %864 = vmatpush1.bf16.msra.mxu0 0
        %865 = vmatprep.subr.bf16.mxu0 0
        %866 = vmatpush1.bf16.msra.mxu0 0
        %867 = vmatprep.subr.bf16.mxu0 0
        %868 = vmatpush1.bf16.msra.mxu0 0
        %869 = vmatprep.subr.bf16.mxu0 0
        %870 = vmatpush1.bf16.msra.mxu0 0
        %871 = vmatprep.subr.bf16.mxu0 0
        %872 = vmatpush1.bf16.msra.mxu0 0
        %873 = vmatprep.mubr.bf16.mxu0 0
        %874 = vmatmul.mubr.bf16.gmra.mrb[0].mxu0 %v839
        %v875 = vpop.f32.mrb[0].mxu0
        %v876 = vadd.f32 %v823, %v875
        %v877 = vpop.f32.mrb[0].mxu0
        %v878 = vpop.f32.mrb[0].mxu0
        %v879 = vpop.f32.mrb[0].mxu0
        %880 = vdwg.mxu0
        %s881 = scalar_lea.vmem %s577, 16
        %v882 = vld [vmem:[%s881] sm:$0xf]
        %v883 = vld [vmem:[%s881 + $0x4] sm:$0xf]
        %v884 = vld [vmem:[%s881 + $0x8] sm:$0xf]
        %v885 = vld [vmem:[%s881 + $0xc] sm:$0xf]
        %s886 = scalar_lea.vmem %s581, 1
        %v887 = vld [vmem:[%s886] sm:$0x1]
        %v889 = vlaneseq
        %v890 = vshrl.u32 %v889, 7
        %v891 = vsub.s32 0, %v890
        %v892 = vrot.slane %v887, %v891
        %v898 = vunpack.c.l.b16 %v882
        %v899 = vunpack.c.l.b16 %v883
        %v900 = vunpack.c.l.b16 %v884
        %v901 = vunpack.c.l.b16 %v885
        %v902 = vpack.c.b16 %v899, %v898
        %v903 = vpack.c.b16 %v901, %v900
        %906 = vmatprep.subr.bf16.mxu0 0
        %907 = vmatpush1.bf16.msra.mxu0 %v902
        %908 = vmatprep.subr.bf16.mxu0 0
        %909 = vmatpush1.bf16.msra.mxu0 %v903
        %910 = vmatprep.subr.bf16.mxu0 0
        %911 = vmatpush1.bf16.msra.mxu0 0
        %912 = vmatprep.subr.bf16.mxu0 0
        %913 = vmatpush1.bf16.msra.mxu0 0
        %914 = vmatprep.subr.bf16.mxu0 0
        %915 = vmatpush1.bf16.msra.mxu0 0
        %916 = vmatprep.subr.bf16.mxu0 0
        %917 = vmatpush1.bf16.msra.mxu0 0
        %918 = vmatprep.subr.bf16.mxu0 0
        %919 = vmatpush1.bf16.msra.mxu0 0
        %920 = vmatprep.subr.bf16.mxu0 0
        %921 = vmatpush1.bf16.msra.mxu0 0
        %922 = vmatprep.subr.bf16.mxu0 0
        %923 = vmatpush1.bf16.msra.mxu0 0
        %924 = vmatprep.subr.bf16.mxu0 0
        %925 = vmatpush1.bf16.msra.mxu0 0
        %926 = vmatprep.subr.bf16.mxu0 0
        %927 = vmatpush1.bf16.msra.mxu0 0
        %928 = vmatprep.subr.bf16.mxu0 0
        %929 = vmatpush1.bf16.msra.mxu0 0
        %930 = vmatprep.subr.bf16.mxu0 0
        %931 = vmatpush1.bf16.msra.mxu0 0
        %932 = vmatprep.subr.bf16.mxu0 0
        %933 = vmatpush1.bf16.msra.mxu0 0
        %934 = vmatprep.subr.bf16.mxu0 0
        %935 = vmatpush1.bf16.msra.mxu0 0
        %936 = vmatprep.subr.bf16.mxu0 0
        %937 = vmatpush1.bf16.msra.mxu0 0
        %938 = vmatprep.mubr.bf16.mxu0 0
        %939 = vmatmul.mubr.bf16.gmra.mrb[0].mxu0 %v839
        %v940 = vpop.f32.mrb[0].mxu0
        %v941 = vadd.f32 %v892, %v940
        %v942 = vpop.f32.mrb[0].mxu0
        %v943 = vpop.f32.mrb[0].mxu0
        %v944 = vpop.f32.mrb[0].mxu0
        %945 = vdwg.mxu0
        %s946 = scalar_lea.vmem %s577, 32
        %v947 = vld [vmem:[%s946] sm:$0xf]
        %v948 = vld [vmem:[%s946 + $0x4] sm:$0xf]
        %v949 = vld [vmem:[%s946 + $0x8] sm:$0xf]
        %v950 = vld [vmem:[%s946 + $0xc] sm:$0xf]
        %s951 = scalar_lea.vmem %s581, 2
        %v952 = vld [vmem:[%s951] sm:$0x1]
        %v954 = vlaneseq
        %v955 = vshrl.u32 %v954, 7
        %v956 = vsub.s32 0, %v955
        %v957 = vrot.slane %v952, %v956
        %v963 = vunpack.c.l.b16 %v947
        %v964 = vunpack.c.l.b16 %v948
        %v965 = vunpack.c.l.b16 %v949
        %v966 = vunpack.c.l.b16 %v950
        %v967 = vpack.c.b16 %v964, %v963
        %v968 = vpack.c.b16 %v966, %v965
        %971 = vmatprep.subr.bf16.mxu0 0
        %972 = vmatpush1.bf16.msra.mxu0 %v967
        %973 = vmatprep.subr.bf16.mxu0 0
        %974 = vmatpush1.bf16.msra.mxu0 %v968
        %975 = vmatprep.subr.bf16.mxu0 0
        %976 = vmatpush1.bf16.msra.mxu0 0
        %977 = vmatprep.subr.bf16.mxu0 0
        %978 = vmatpush1.bf16.msra.mxu0 0
        %979 = vmatprep.subr.bf16.mxu0 0
        %980 = vmatpush1.bf16.msra.mxu0 0
        %981 = vmatprep.subr.bf16.mxu0 0
        %982 = vmatpush1.bf16.msra.mxu0 0
        %983 = vmatprep.subr.bf16.mxu0 0
        %984 = vmatpush1.bf16.msra.mxu0 0
        %985 = vmatprep.subr.bf16.mxu0 0
        %986 = vmatpush1.bf16.msra.mxu0 0
        %987 = vmatprep.subr.bf16.mxu0 0
        %988 = vmatpush1.bf16.msra.mxu0 0
        %989 = vmatprep.subr.bf16.mxu0 0
        %990 = vmatpush1.bf16.msra.mxu0 0
        %991 = vmatprep.subr.bf16.mxu0 0
        %992 = vmatpush1.bf16.msra.mxu0 0
        %993 = vmatprep.subr.bf16.mxu0 0
        %994 = vmatpush1.bf16.msra.mxu0 0
        %995 = vmatprep.subr.bf16.mxu0 0
        %996 = vmatpush1.bf16.msra.mxu0 0
        %997 = vmatprep.subr.bf16.mxu0 0
        %998 = vmatpush1.bf16.msra.mxu0 0
        %999 = vmatprep.subr.bf16.mxu0 0
        %1000 = vmatpush1.bf16.msra.mxu0 0
        %1001 = vmatprep.subr.bf16.mxu0 0
        %1002 = vmatpush1.bf16.msra.mxu0 0
        %1003 = vmatprep.mubr.bf16.mxu0 0
        %1004 = vmatmul.mubr.bf16.gmra.mrb[0].mxu0 %v839
        %v1005 = vpop.f32.mrb[0].mxu0
        %v1006 = vadd.f32 %v957, %v1005
        %v1007 = vpop.f32.mrb[0].mxu0
        %v1008 = vpop.f32.mrb[0].mxu0
        %v1009 = vpop.f32.mrb[0].mxu0
        %1010 = vdwg.mxu0
        %v1011 = vpack.c.bf16 %v876, %v876
        %v1012 = vpack.c.bf16 %v941, %v941
        %v1013 = vpack.c.bf16 %v1006, %v1006
        %vm1014 = vcmask 64512
        %v1016 = vsel %vm1014, %v1011, 0
        %v1019 = vsel %vm1014, %v1012, 0
        %1021 = vmatprep.subr.bf16.mxu0 0
        %1022 = vmatpush1.bf16.xpose.msra.mxu0 %v1019
        %1023 = vmatprep.subr.bf16.mxu0 0
        %1024 = vmatpush1.bf16.xpose.msra.mxu0 0
        %1025 = vmatprep.subr.bf16.mxu0 0
        %1026 = vmatpush1.bf16.xpose.msra.mxu0 0
        %1027 = vmatprep.subr.bf16.mxu0 0
        %1028 = vmatpush1.bf16.xpose.msra.mxu0 0
        %1029 = vmatprep.subr.bf16.mxu0 0
        %1030 = vmatpush1.bf16.xpose.msra.mxu0 0
        %1031 = vmatprep.subr.bf16.mxu0 0
        %1032 = vmatpush1.bf16.xpose.msra.mxu0 0
        %1033 = vmatprep.subr.bf16.mxu0 0
        %1034 = vmatpush1.bf16.xpose.msra.mxu0 0
        %1035 = vmatprep.subr.bf16.mxu0 0
        %1036 = vmatpush1.bf16.xpose.msra.mxu0 0
        %1037 = vmatprep.subr.bf16.mxu0 0
        %1038 = vmatpush1.bf16.xpose.msra.mxu0 0
        %1039 = vmatprep.subr.bf16.mxu0 0
        %1040 = vmatpush1.bf16.xpose.msra.mxu0 0
        %1041 = vmatprep.subr.bf16.mxu0 0
        %1042 = vmatpush1.bf16.xpose.msra.mxu0 0
        %1043 = vmatprep.subr.bf16.mxu0 0
        %1044 = vmatpush1.bf16.xpose.msra.mxu0 0
        %1045 = vmatprep.subr.bf16.mxu0 0
        %1046 = vmatpush1.bf16.xpose.msra.mxu0 0
        %1047 = vmatprep.subr.bf16.mxu0 0
        %1048 = vmatpush1.bf16.xpose.msra.mxu0 0
        %1049 = vmatprep.subr.bf16.mxu0 0
        %1050 = vmatpush1.bf16.xpose.msra.mxu0 0
        %1051 = vmatprep.subr.bf16.mxu0 0
        %1052 = vmatpush1.bf16.xpose.msra.mxu0 0
        %1053 = vmatprep.mubr.bf16.mxu0 0
        %1054 = vmatmul.mubr.bf16.gmra.mrb[0].mxu0 %v1016
        %v1055 = vpop.f32.mrb[0].mxu0
        %v1056 = vadd.f32 0.0, %v1055
        %v1057 = vpop.f32.mrb[0].mxu0
        %v1058 = vpop.f32.mrb[0].mxu0
        %v1059 = vpop.f32.mrb[0].mxu0
        %1060 = vdwg.mxu0
        %v1061 = vmul.f32 %v1056, 0.35355338
        %vm1062 = vcmask 36864
        %v1063 = vsel %vm1062, %v1061, -inf
        %1064 = vmax.xlane.f32.xlu0 %v1063
        %v1065 = vpop.xlane.xlu0 %1064
        %v1066 = vsub.f32 %v1061, %v1065
        %v1067 = vmul.f32 %v1066, 1.442695
        %v1068 = vpow.pop %v1067
        %v1069 = vsel %vm1062, %v1068, 0.0
        %1070 = vadd.xlane.f32.xlu0 %v1069
        %v1071 = vpop.xlane.xlu0 %1070
        %v1072 = vrcp.pop %v1071
        %v1073 = vmul.f32 %v1068, %v1072
        %v1074 = vpack.c.bf16 %v1073, %v1073
        %vm1075 = vcmask 39936
        %v1077 = vsel %vm1075, %v1074, 0
        %vm1079 = vcmask 1041408
        %vm1080 = vcmask 1042432
        %v1081 = vsel %vm1079, 4294967295, 65535
        %v1082 = vsel %vm1080, %v1081, 0
        %v1084 = vand.u32 %v1013, %v1082
        %1086 = vmatprep.subr.bf16.mxu0 0
        %1087 = vmatpush1.bf16.msra.mxu0 %v1084
        %1088 = vmatprep.subr.bf16.mxu0 0
        %1089 = vmatpush1.bf16.msra.mxu0 0
        %1090 = vmatprep.subr.bf16.mxu0 0
        %1091 = vmatpush1.bf16.msra.mxu0 0
        %1092 = vmatprep.subr.bf16.mxu0 0
        %1093 = vmatpush1.bf16.msra.mxu0 0
        %1094 = vmatprep.subr.bf16.mxu0 0
        %1095 = vmatpush1.bf16.msra.mxu0 0
        %1096 = vmatprep.subr.bf16.mxu0 0
        %1097 = vmatpush1.bf16.msra.mxu0 0
        %1098 = vmatprep.subr.bf16.mxu0 0
        %1099 = vmatpush1.bf16.msra.mxu0 0
        %1100 = vmatprep.subr.bf16.mxu0 0
        %1101 = vmatpush1.bf16.msra.mxu0 0
        %1102 = vmatprep.subr.bf16.mxu0 0
        %1103 = vmatpush1.bf16.msra.mxu0 0
        %1104 = vmatprep.subr.bf16.mxu0 0
        %1105 = vmatpush1.bf16.msra.mxu0 0
        %1106 = vmatprep.subr.bf16.mxu0 0
        %1107 = vmatpush1.bf16.msra.mxu0 0
        %1108 = vmatprep.subr.bf16.mxu0 0
        %1109 = vmatpush1.bf16.msra.mxu0 0
        %1110 = vmatprep.subr.bf16.mxu0 0
        %1111 = vmatpush1.bf16.msra.mxu0 0
        %1112 = vmatprep.subr.bf16.mxu0 0
        %1113 = vmatpush1.bf16.msra.mxu0 0
        %1114 = vmatprep.subr.bf16.mxu0 0
        %1115 = vmatpush1.bf16.msra.mxu0 0
        %1116 = vmatprep.subr.bf16.mxu0 0
        %1117 = vmatpush1.bf16.msra.mxu0 0
        %1118 = vmatprep.mubr.bf16.mxu0 0
        %1119 = vmatmul.mubr.bf16.gmra.mrb[0].mxu0 %v1077
        %v1120 = vpop.f32.mrb[0].mxu0
        %v1121 = vadd.f32 0.0, %v1120
        %v1122 = vpop.f32.mrb[0].mxu0
        %v1123 = vpop.f32.mrb[0].mxu0
        %v1124 = vpop.f32.mrb[0].mxu0
        %1125 = vdwg.mxu0
        %1127 = vrot.lane.b32.xlu0 %v1011, 120
        %v1128 = vpop.permute.xlu0 %1127
        %1130 = vrot.lane.b32.xlu0 %v1012, 120
        %v1131 = vpop.permute.xlu0 %1130
        %v1133 = vsel %vm1014, %v1128, 0
        %v1136 = vsel %vm1014, %v1131, 0
        %1138 = vmatprep.subr.bf16.mxu0 0
        %1139 = vmatpush1.bf16.xpose.msra.mxu0 %v1136
        %1140 = vmatprep.subr.bf16.mxu0 0
        %1141 = vmatpush1.bf16.xpose.msra.mxu0 0
        %1142 = vmatprep.subr.bf16.mxu0 0
        %1143 = vmatpush1.bf16.xpose.msra.mxu0 0
        %1144 = vmatprep.subr.bf16.mxu0 0
        %1145 = vmatpush1.bf16.xpose.msra.mxu0 0
        %1146 = vmatprep.subr.bf16.mxu0 0
        %1147 = vmatpush1.bf16.xpose.msra.mxu0 0
        %1148 = vmatprep.subr.bf16.mxu0 0
        %1149 = vmatpush1.bf16.xpose.msra.mxu0 0
        %1150 = vmatprep.subr.bf16.mxu0 0
        %1151 = vmatpush1.bf16.xpose.msra.mxu0 0
        %1152 = vmatprep.subr.bf16.mxu0 0
        %1153 = vmatpush1.bf16.xpose.msra.mxu0 0
        %1154 = vmatprep.subr.bf16.mxu0 0
        %1155 = vmatpush1.bf16.xpose.msra.mxu0 0
        %1156 = vmatprep.subr.bf16.mxu0 0
        %1157 = vmatpush1.bf16.xpose.msra.mxu0 0
        %1158 = vmatprep.subr.bf16.mxu0 0
        %1159 = vmatpush1.bf16.xpose.msra.mxu0 0
        %1160 = vmatprep.subr.bf16.mxu0 0
        %1161 = vmatpush1.bf16.xpose.msra.mxu0 0
        %1162 = vmatprep.subr.bf16.mxu0 0
        %1163 = vmatpush1.bf16.xpose.msra.mxu0 0
        %1164 = vmatprep.subr.bf16.mxu0 0
        %1165 = vmatpush1.bf16.xpose.msra.mxu0 0
        %1166 = vmatprep.subr.bf16.mxu0 0
        %1167 = vmatpush1.bf16.xpose.msra.mxu0 0
        %1168 = vmatprep.subr.bf16.mxu0 0
        %1169 = vmatpush1.bf16.xpose.msra.mxu0 0
        %1170 = vmatprep.mubr.bf16.mxu0 0
        %1171 = vmatmul.mubr.bf16.gmra.mrb[0].mxu0 %v1133
        %v1172 = vpop.f32.mrb[0].mxu0
        %v1173 = vadd.f32 0.0, %v1172
        %v1174 = vpop.f32.mrb[0].mxu0
        %v1175 = vpop.f32.mrb[0].mxu0
        %v1176 = vpop.f32.mrb[0].mxu0
        %1177 = vdwg.mxu0
        %v1178 = vmul.f32 %v1173, 0.35355338
        %v1179 = vsel %vm1062, %v1178, -inf
        %1180 = vmax.xlane.f32.xlu0 %v1179
        %v1181 = vpop.xlane.xlu0 %1180
        %v1182 = vsub.f32 %v1178, %v1181
        %v1183 = vmul.f32 %v1182, 1.442695
        %v1184 = vpow.pop %v1183
        %v1185 = vsel %vm1062, %v1184, 0.0
        %1186 = vadd.xlane.f32.xlu0 %v1185
        %v1187 = vpop.xlane.xlu0 %1186
        %v1188 = vrcp.pop %v1187
        %v1189 = vmul.f32 %v1184, %v1188
        %v1190 = vpack.c.bf16 %v1189, %v1189
        %1192 = vrot.lane.b32.xlu0 %v1013, 120
        %v1193 = vpop.permute.xlu0 %1192
        %v1195 = vsel %vm1075, %v1190, 0
        %v1198 = vand.u32 %v1193, %v1082
        %1200 = vmatprep.subr.bf16.mxu0 0
        %1201 = vmatpush1.bf16.msra.mxu0 %v1198
        %1202 = vmatprep.subr.bf16.mxu0 0
        %1203 = vmatpush1.bf16.msra.mxu0 0
        %1204 = vmatprep.subr.bf16.mxu0 0
        %1205 = vmatpush1.bf16.msra.mxu0 0
        %1206 = vmatprep.subr.bf16.mxu0 0
        %1207 = vmatpush1.bf16.msra.mxu0 0
        %1208 = vmatprep.subr.bf16.mxu0 0
        %1209 = vmatpush1.bf16.msra.mxu0 0
        %1210 = vmatprep.subr.bf16.mxu0 0
        %1211 = vmatpush1.bf16.msra.mxu0 0
        %1212 = vmatprep.subr.bf16.mxu0 0
        %1213 = vmatpush1.bf16.msra.mxu0 0
        %1214 = vmatprep.subr.bf16.mxu0 0
        %1215 = vmatpush1.bf16.msra.mxu0 0
        %1216 = vmatprep.subr.bf16.mxu0 0
        %1217 = vmatpush1.bf16.msra.mxu0 0
        %1218 = vmatprep.subr.bf16.mxu0 0
        %1219 = vmatpush1.bf16.msra.mxu0 0
        %1220 = vmatprep.subr.bf16.mxu0 0
        %1221 = vmatpush1.bf16.msra.mxu0 0
        %1222 = vmatprep.subr.bf16.mxu0 0
        %1223 = vmatpush1.bf16.msra.mxu0 0
        %1224 = vmatprep.subr.bf16.mxu0 0
        %1225 = vmatpush1.bf16.msra.mxu0 0
        %1226 = vmatprep.subr.bf16.mxu0 0
        %1227 = vmatpush1.bf16.msra.mxu0 0
        %1228 = vmatprep.subr.bf16.mxu0 0
        %1229 = vmatpush1.bf16.msra.mxu0 0
        %1230 = vmatprep.subr.bf16.mxu0 0
        %1231 = vmatpush1.bf16.msra.mxu0 0
        %1232 = vmatprep.mubr.bf16.mxu0 0
        %1233 = vmatmul.mubr.bf16.gmra.mrb[0].mxu0 %v1195
        %v1234 = vpop.f32.mrb[0].mxu0
        %v1235 = vadd.f32 0.0, %v1234
        %v1236 = vpop.f32.mrb[0].mxu0
        %v1237 = vpop.f32.mrb[0].mxu0
        %v1238 = vpop.f32.mrb[0].mxu0
        %1239 = vdwg.mxu0
        %1240 = vrot.lane.b32.xlu0 %v1011, 112
        %v1241 = vpop.permute.xlu0 %1240
        %1242 = vrot.lane.b32.xlu0 %v1012, 112
        %v1243 = vpop.permute.xlu0 %1242
        %v1245 = vsel %vm1014, %v1241, 0
        %v1248 = vsel %vm1014, %v1243, 0
        %1250 = vmatprep.subr.bf16.mxu0 0
        %1251 = vmatpush1.bf16.xpose.msra.mxu0 %v1248
        %1252 = vmatprep.subr.bf16.mxu0 0
        %1253 = vmatpush1.bf16.xpose.msra.mxu0 0
        %1254 = vmatprep.subr.bf16.mxu0 0
        %1255 = vmatpush1.bf16.xpose.msra.mxu0 0
        %1256 = vmatprep.subr.bf16.mxu0 0
        %1257 = vmatpush1.bf16.xpose.msra.mxu0 0
        %1258 = vmatprep.subr.bf16.mxu0 0
        %1259 = vmatpush1.bf16.xpose.msra.mxu0 0
        %1260 = vmatprep.subr.bf16.mxu0 0
        %1261 = vmatpush1.bf16.xpose.msra.mxu0 0
        %1262 = vmatprep.subr.bf16.mxu0 0
        %1263 = vmatpush1.bf16.xpose.msra.mxu0 0
        %1264 = vmatprep.subr.bf16.mxu0 0
        %1265 = vmatpush1.bf16.xpose.msra.mxu0 0
        %1266 = vmatprep.subr.bf16.mxu0 0
        %1267 = vmatpush1.bf16.xpose.msra.mxu0 0
        %1268 = vmatprep.subr.bf16.mxu0 0
        %1269 = vmatpush1.bf16.xpose.msra.mxu0 0
        %1270 = vmatprep.subr.bf16.mxu0 0
        %1271 = vmatpush1.bf16.xpose.msra.mxu0 0
        %1272 = vmatprep.subr.bf16.mxu0 0
        %1273 = vmatpush1.bf16.xpose.msra.mxu0 0
        %1274 = vmatprep.subr.bf16.mxu0 0
        %1275 = vmatpush1.bf16.xpose.msra.mxu0 0
        %1276 = vmatprep.subr.bf16.mxu0 0
        %1277 = vmatpush1.bf16.xpose.msra.mxu0 0
        %1278 = vmatprep.subr.bf16.mxu0 0
        %1279 = vmatpush1.bf16.xpose.msra.mxu0 0
        %1280 = vmatprep.subr.bf16.mxu0 0
        %1281 = vmatpush1.bf16.xpose.msra.mxu0 0
        %1282 = vmatprep.mubr.bf16.mxu0 0
        %1283 = vmatmul.mubr.bf16.gmra.mrb[0].mxu0 %v1245
        %v1284 = vpop.f32.mrb[0].mxu0
        %v1285 = vadd.f32 0.0, %v1284
        %v1286 = vpop.f32.mrb[0].mxu0
        %v1287 = vpop.f32.mrb[0].mxu0
        %v1288 = vpop.f32.mrb[0].mxu0
        %1289 = vdwg.mxu0
        %v1290 = vmul.f32 %v1285, 0.35355338
        %v1291 = vsel %vm1062, %v1290, -inf
        %1292 = vmax.xlane.f32.xlu0 %v1291
        %v1293 = vpop.xlane.xlu0 %1292
        %v1294 = vsub.f32 %v1290, %v1293
        %v1295 = vmul.f32 %v1294, 1.442695
        %v1296 = vpow.pop %v1295
        %v1297 = vsel %vm1062, %v1296, 0.0
        %1298 = vadd.xlane.f32.xlu0 %v1297
        %v1299 = vpop.xlane.xlu0 %1298
        %v1300 = vrcp.pop %v1299
        %v1301 = vmul.f32 %v1296, %v1300
        %v1302 = vpack.c.bf16 %v1301, %v1301
        %1303 = vrot.lane.b32.xlu0 %v1013, 112
        %v1304 = vpop.permute.xlu0 %1303
        %v1306 = vsel %vm1075, %v1302, 0
        %v1309 = vand.u32 %v1304, %v1082
        %1311 = vmatprep.subr.bf16.mxu0 0
        %1312 = vmatpush1.bf16.msra.mxu0 %v1309
        %1313 = vmatprep.subr.bf16.mxu0 0
        %1314 = vmatpush1.bf16.msra.mxu0 0
        %1315 = vmatprep.subr.bf16.mxu0 0
        %1316 = vmatpush1.bf16.msra.mxu0 0
        %1317 = vmatprep.subr.bf16.mxu0 0
        %1318 = vmatpush1.bf16.msra.mxu0 0
        %1319 = vmatprep.subr.bf16.mxu0 0
        %1320 = vmatpush1.bf16.msra.mxu0 0
        %1321 = vmatprep.subr.bf16.mxu0 0
        %1322 = vmatpush1.bf16.msra.mxu0 0
        %1323 = vmatprep.subr.bf16.mxu0 0
        %1324 = vmatpush1.bf16.msra.mxu0 0
        %1325 = vmatprep.subr.bf16.mxu0 0
        %1326 = vmatpush1.bf16.msra.mxu0 0
        %1327 = vmatprep.subr.bf16.mxu0 0
        %1328 = vmatpush1.bf16.msra.mxu0 0
        %1329 = vmatprep.subr.bf16.mxu0 0
        %1330 = vmatpush1.bf16.msra.mxu0 0
        %1331 = vmatprep.subr.bf16.mxu0 0
        %1332 = vmatpush1.bf16.msra.mxu0 0
        %1333 = vmatprep.subr.bf16.mxu0 0
        %1334 = vmatpush1.bf16.msra.mxu0 0
        %1335 = vmatprep.subr.bf16.mxu0 0
        %1336 = vmatpush1.bf16.msra.mxu0 0
        %1337 = vmatprep.subr.bf16.mxu0 0
        %1338 = vmatpush1.bf16.msra.mxu0 0
        %1339 = vmatprep.subr.bf16.mxu0 0
        %1340 = vmatpush1.bf16.msra.mxu0 0
        %1341 = vmatprep.subr.bf16.mxu0 0
        %1342 = vmatpush1.bf16.msra.mxu0 0
        %1343 = vmatprep.mubr.bf16.mxu0 0
        %1344 = vmatmul.mubr.bf16.gmra.mrb[0].mxu0 %v1306
        %v1345 = vpop.f32.mrb[0].mxu0
        %v1346 = vadd.f32 0.0, %v1345
        %v1347 = vpop.f32.mrb[0].mxu0
        %v1348 = vpop.f32.mrb[0].mxu0
        %v1349 = vpop.f32.mrb[0].mxu0
        %1350 = vdwg.mxu0
        %1351 = vrot.lane.b32.xlu0 %v1011, 104
        %v1352 = vpop.permute.xlu0 %1351
        %1353 = vrot.lane.b32.xlu0 %v1012, 104
        %v1354 = vpop.permute.xlu0 %1353
        %v1356 = vsel %vm1014, %v1352, 0
        %v1359 = vsel %vm1014, %v1354, 0
        %1361 = vmatprep.subr.bf16.mxu0 0
        %1362 = vmatpush1.bf16.xpose.msra.mxu0 %v1359
        %1363 = vmatprep.subr.bf16.mxu0 0
        %1364 = vmatpush1.bf16.xpose.msra.mxu0 0
        %1365 = vmatprep.subr.bf16.mxu0 0
        %1366 = vmatpush1.bf16.xpose.msra.mxu0 0
        %1367 = vmatprep.subr.bf16.mxu0 0
        %1368 = vmatpush1.bf16.xpose.msra.mxu0 0
        %1369 = vmatprep.subr.bf16.mxu0 0
        %1370 = vmatpush1.bf16.xpose.msra.mxu0 0
        %1371 = vmatprep.subr.bf16.mxu0 0
        %1372 = vmatpush1.bf16.xpose.msra.mxu0 0
        %1373 = vmatprep.subr.bf16.mxu0 0
        %1374 = vmatpush1.bf16.xpose.msra.mxu0 0
        %1375 = vmatprep.subr.bf16.mxu0 0
        %1376 = vmatpush1.bf16.xpose.msra.mxu0 0
        %1377 = vmatprep.subr.bf16.mxu0 0
        %1378 = vmatpush1.bf16.xpose.msra.mxu0 0
        %1379 = vmatprep.subr.bf16.mxu0 0
        %1380 = vmatpush1.bf16.xpose.msra.mxu0 0
        %1381 = vmatprep.subr.bf16.mxu0 0
        %1382 = vmatpush1.bf16.xpose.msra.mxu0 0
        %1383 = vmatprep.subr.bf16.mxu0 0
        %1384 = vmatpush1.bf16.xpose.msra.mxu0 0
        %1385 = vmatprep.subr.bf16.mxu0 0
        %1386 = vmatpush1.bf16.xpose.msra.mxu0 0
        %1387 = vmatprep.subr.bf16.mxu0 0
        %1388 = vmatpush1.bf16.xpose.msra.mxu0 0
        %1389 = vmatprep.subr.bf16.mxu0 0
        %1390 = vmatpush1.bf16.xpose.msra.mxu0 0
        %1391 = vmatprep.subr.bf16.mxu0 0
        %1392 = vmatpush1.bf16.xpose.msra.mxu0 0
        %1393 = vmatprep.mubr.bf16.mxu0 0
        %1394 = vmatmul.mubr.bf16.gmra.mrb[0].mxu0 %v1356
        %v1395 = vpop.f32.mrb[0].mxu0
        %v1396 = vadd.f32 0.0, %v1395
        %v1397 = vpop.f32.mrb[0].mxu0
        %v1398 = vpop.f32.mrb[0].mxu0
        %v1399 = vpop.f32.mrb[0].mxu0
        %1400 = vdwg.mxu0
        %v1401 = vmul.f32 %v1396, 0.35355338
        %v1402 = vsel %vm1062, %v1401, -inf
        %1403 = vmax.xlane.f32.xlu0 %v1402
        %v1404 = vpop.xlane.xlu0 %1403
        %v1405 = vsub.f32 %v1401, %v1404
        %v1406 = vmul.f32 %v1405, 1.442695
        %v1407 = vpow.pop %v1406
        %v1408 = vsel %vm1062, %v1407, 0.0
        %1409 = vadd.xlane.f32.xlu0 %v1408
        %v1410 = vpop.xlane.xlu0 %1409
        %v1411 = vrcp.pop %v1410
        %v1412 = vmul.f32 %v1407, %v1411
        %v1413 = vpack.c.bf16 %v1412, %v1412
        %1414 = vrot.lane.b32.xlu0 %v1013, 104
        %v1415 = vpop.permute.xlu0 %1414
        %v1417 = vsel %vm1075, %v1413, 0
        %v1420 = vand.u32 %v1415, %v1082
        %1422 = vmatprep.subr.bf16.mxu0 0
        %1423 = vmatpush1.bf16.msra.mxu0 %v1420
        %1424 = vmatprep.subr.bf16.mxu0 0
        %1425 = vmatpush1.bf16.msra.mxu0 0
        %1426 = vmatprep.subr.bf16.mxu0 0
        %1427 = vmatpush1.bf16.msra.mxu0 0
        %1428 = vmatprep.subr.bf16.mxu0 0
        %1429 = vmatpush1.bf16.msra.mxu0 0
        %1430 = vmatprep.subr.bf16.mxu0 0
        %1431 = vmatpush1.bf16.msra.mxu0 0
        %1432 = vmatprep.subr.bf16.mxu0 0
        %1433 = vmatpush1.bf16.msra.mxu0 0
        %1434 = vmatprep.subr.bf16.mxu0 0
        %1435 = vmatpush1.bf16.msra.mxu0 0
        %1436 = vmatprep.subr.bf16.mxu0 0
        %1437 = vmatpush1.bf16.msra.mxu0 0
        %1438 = vmatprep.subr.bf16.mxu0 0
        %1439 = vmatpush1.bf16.msra.mxu0 0
        %1440 = vmatprep.subr.bf16.mxu0 0
        %1441 = vmatpush1.bf16.msra.mxu0 0
        %1442 = vmatprep.subr.bf16.mxu0 0
        %1443 = vmatpush1.bf16.msra.mxu0 0
        %1444 = vmatprep.subr.bf16.mxu0 0
        %1445 = vmatpush1.bf16.msra.mxu0 0
        %1446 = vmatprep.subr.bf16.mxu0 0
        %1447 = vmatpush1.bf16.msra.mxu0 0
        %1448 = vmatprep.subr.bf16.mxu0 0
        %1449 = vmatpush1.bf16.msra.mxu0 0
        %1450 = vmatprep.subr.bf16.mxu0 0
        %1451 = vmatpush1.bf16.msra.mxu0 0
        %1452 = vmatprep.subr.bf16.mxu0 0
        %1453 = vmatpush1.bf16.msra.mxu0 0
        %1454 = vmatprep.mubr.bf16.mxu0 0
        %1455 = vmatmul.mubr.bf16.gmra.mrb[0].mxu0 %v1417
        %v1456 = vpop.f32.mrb[0].mxu0
        %v1457 = vadd.f32 0.0, %v1456
        %v1458 = vpop.f32.mrb[0].mxu0
        %v1459 = vpop.f32.mrb[0].mxu0
        %v1460 = vpop.f32.mrb[0].mxu0
        %1461 = vdwg.mxu0
        %1463 = vrot.lane.b32.xlu0 %v1235, 8
        %v1464 = vpop.permute.xlu0 %1463
        %1467 = vrot.lane.b32.xlu0 %v1346, 16
        %v1468 = vpop.permute.xlu0 %1467
        %1471 = vrot.lane.b32.xlu0 %v1457, 24
        %v1472 = vpop.permute.xlu0 %1471
        %v1474 = vsel %vm1014, %v1121, %v1464
        %vm1475 = vcmask 130048
        %v1476 = vsel %vm1475, %v1474, %v1468
        %vm1477 = vcmask 195584
        %v1478 = vsel %vm1477, %v1476, %v1472
        %v1479 = vpack.c.bf16 %v1478, %v1478
        %v1480 = vld [vmem:[%s586] sm:$0xf]
        %v1481 = vld [vmem:[%s586 + $0x4] sm:$0xf]
        %v1482 = vld [vmem:[%s586 + $0x8] sm:$0xf]
        %v1483 = vld [vmem:[%s586 + $0xc] sm:$0xf]
        %v1484 = vld [vmem:[%s589] sm:$0x1]
        %v1486 = vlaneseq
        %v1487 = vshrl.u32 %v1486, 7
        %v1488 = vsub.s32 0, %v1487
        %v1489 = vrot.slane %v1484, %v1488
        %v1495 = vunpack.c.l.b16 %v1480
        %v1496 = vunpack.c.l.b16 %v1481
        %v1497 = vunpack.c.l.b16 %v1482
        %v1498 = vunpack.c.l.b16 %v1483
        %v1499 = vpack.c.b16 %v1496, %v1495
        %v1500 = vpack.c.b16 %v1498, %v1497
        %v1504 = vsel %vm837, %v1479, 0
        %1506 = vmatprep.subr.bf16.mxu0 0
        %1507 = vmatpush1.bf16.msra.mxu0 %v1499
        %1508 = vmatprep.subr.bf16.mxu0 0
        %1509 = vmatpush1.bf16.msra.mxu0 %v1500
        %1510 = vmatprep.subr.bf16.mxu0 0
        %1511 = vmatpush1.bf16.msra.mxu0 0
        %1512 = vmatprep.subr.bf16.mxu0 0
        %1513 = vmatpush1.bf16.msra.mxu0 0
        %1514 = vmatprep.subr.bf16.mxu0 0
        %1515 = vmatpush1.bf16.msra.mxu0 0
        %1516 = vmatprep.subr.bf16.mxu0 0
        %1517 = vmatpush1.bf16.msra.mxu0 0
        %1518 = vmatprep.subr.bf16.mxu0 0
        %1519 = vmatpush1.bf16.msra.mxu0 0
        %1520 = vmatprep.subr.bf16.mxu0 0
        %1521 = vmatpush1.bf16.msra.mxu0 0
        %1522 = vmatprep.subr.bf16.mxu0 0
        %1523 = vmatpush1.bf16.msra.mxu0 0
        %1524 = vmatprep.subr.bf16.mxu0 0
        %1525 = vmatpush1.bf16.msra.mxu0 0
        %1526 = vmatprep.subr.bf16.mxu0 0
        %1527 = vmatpush1.bf16.msra.mxu0 0
        %1528 = vmatprep.subr.bf16.mxu0 0
        %1529 = vmatpush1.bf16.msra.mxu0 0
        %1530 = vmatprep.subr.bf16.mxu0 0
        %1531 = vmatpush1.bf16.msra.mxu0 0
        %1532 = vmatprep.subr.bf16.mxu0 0
        %1533 = vmatpush1.bf16.msra.mxu0 0
        %1534 = vmatprep.subr.bf16.mxu0 0
        %1535 = vmatpush1.bf16.msra.mxu0 0
        %1536 = vmatprep.subr.bf16.mxu0 0
        %1537 = vmatpush1.bf16.msra.mxu0 0
        %1538 = vmatprep.mubr.bf16.mxu0 0
        %1539 = vmatmul.mubr.bf16.gmra.mrb[0].mxu0 %v1504
        %v1540 = vpop.f32.mrb[0].mxu0
        %v1541 = vadd.f32 %v1489, %v1540
        %v1542 = vpop.f32.mrb[0].mxu0
        %v1543 = vpop.f32.mrb[0].mxu0
        %v1544 = vpop.f32.mrb[0].mxu0
        %1545 = vdwg.mxu0
        %v1546 = vadd.f32 %v786, %v1541
        %v1547 = vsel %vm788, %v1546, 0.0
        %1548 = vadd.xlane.f32.xlu0 %v1547
        %v1549 = vpop.xlane.xlu0 %1548
        %v1550 = vmul.f32 %v1549, %v792
        %v1551 = vsub.f32 %v1546, %v1550
        %v1552 = vmul.f32 %v1551, %v1551
        %v1553 = vsel %vm788, %v1552, 0.0
        %1554 = vadd.xlane.f32.xlu0 %v1553
        %v1555 = vpop.xlane.xlu0 %1554
        %v1556 = vmul.f32 %v1555, %v792
        %v1557 = vadd.f32 %v1556, 1e-05
        %v1558 = vrsqrt.pop %v1557
        %v1559 = vmul.f32 %v1551, %v1558
        %v1560 = vlaneseq
        %v1561 = vshrl.u32 %v1560, 7
        %v1562 = vsub.s32 2, %v1561
        %v1563 = vrot.slane %v787, %v1562
        %v1564 = vmul.f32 %v1559, %v1563
        %v1565 = vlaneseq
        %v1566 = vshrl.u32 %v1565, 7
        %v1567 = vsub.s32 3, %v1566
        %v1568 = vrot.slane %v787, %v1567
        %v1569 = vadd.f32 %v1564, %v1568
        %v1570 = vpack.c.bf16 %v1569, %v1569
        %v1571 = vld [vmem:[%s594] sm:$0xf]
        %v1572 = vld [vmem:[%s594 + $0x4] sm:$0xf]
        %v1573 = vld [vmem:[%s594 + $0x8] sm:$0xf]
        %v1574 = vld [vmem:[%s594 + $0xc] sm:$0xf]
        %v1575 = vld [vmem:[%s597] sm:$0x1]
        %v1577 = vlaneseq
        %v1578 = vshrl.u32 %v1577, 7
        %v1579 = vsub.s32 0, %v1578
        %v1580 = vrot.slane %v1575, %v1579
        %v1586 = vunpack.c.l.b16 %v1571
        %v1587 = vunpack.c.l.b16 %v1572
        %v1588 = vunpack.c.l.b16 %v1573
        %v1589 = vunpack.c.l.b16 %v1574
        %v1590 = vpack.c.b16 %v1587, %v1586
        %v1591 = vpack.c.b16 %v1589, %v1588
        %v1595 = vsel %vm837, %v1570, 0
        %1597 = vmatprep.subr.bf16.mxu0 0
        %1598 = vmatpush1.bf16.msra.mxu0 %v1590
        %1599 = vmatprep.subr.bf16.mxu0 0
        %1600 = vmatpush1.bf16.msra.mxu0 %v1591
        %1601 = vmatprep.subr.bf16.mxu0 0
        %1602 = vmatpush1.bf16.msra.mxu0 0
        %1603 = vmatprep.subr.bf16.mxu0 0
        %1604 = vmatpush1.bf16.msra.mxu0 0
        %1605 = vmatprep.subr.bf16.mxu0 0
        %1606 = vmatpush1.bf16.msra.mxu0 0
        %1607 = vmatprep.subr.bf16.mxu0 0
        %1608 = vmatpush1.bf16.msra.mxu0 0
        %1609 = vmatprep.subr.bf16.mxu0 0
        %1610 = vmatpush1.bf16.msra.mxu0 0
        %1611 = vmatprep.subr.bf16.mxu0 0
        %1612 = vmatpush1.bf16.msra.mxu0 0
        %1613 = vmatprep.subr.bf16.mxu0 0
        %1614 = vmatpush1.bf16.msra.mxu0 0
        %1615 = vmatprep.subr.bf16.mxu0 0
        %1616 = vmatpush1.bf16.msra.mxu0 0
        %1617 = vmatprep.subr.bf16.mxu0 0
        %1618 = vmatpush1.bf16.msra.mxu0 0
        %1619 = vmatprep.subr.bf16.mxu0 0
        %1620 = vmatpush1.bf16.msra.mxu0 0
        %1621 = vmatprep.subr.bf16.mxu0 0
        %1622 = vmatpush1.bf16.msra.mxu0 0
        %1623 = vmatprep.subr.bf16.mxu0 0
        %1624 = vmatpush1.bf16.msra.mxu0 0
        %1625 = vmatprep.subr.bf16.mxu0 0
        %1626 = vmatpush1.bf16.msra.mxu0 0
        %1627 = vmatprep.subr.bf16.mxu0 0
        %1628 = vmatpush1.bf16.msra.mxu0 0
        %1629 = vmatprep.mubr.bf16.mxu0 0
        %1630 = vmatmul.mubr.bf16.gmra.mrb[0].mxu0 %v1595
        %v1631 = vpop.f32.mrb[0].mxu0
        %v1632 = vadd.f32 %v1580, %v1631
        %v1633 = vpop.f32.mrb[0].mxu0
        %v1634 = vpop.f32.mrb[0].mxu0
        %v1635 = vpop.f32.mrb[0].mxu0
        %1636 = vdwg.mxu0
        %v1637 = vmul.f32 %v1632, 1.702
        %v1638 = vxor.u32 %v1637, 2147483648
        %v1639 = vmul.f32 %v1638, 1.442695
        %v1640 = vpow.pop %v1639
        %v1641 = vadd.f32 %v1640, 1.0
        %v1642 = vrcp.pop %v1641
        %v1643 = vmul.f32 1.0, %v1642
        %v1644 = vmul.f32 %v1632, %v1643
        %v1645 = vpack.c.bf16 %v1644, %v1644
        %v1646 = vld [vmem:[%s602] sm:$0xf]
        %v1647 = vld [vmem:[%s602 + $0x4] sm:$0xf]
        %v1648 = vld [vmem:[%s602 + $0x8] sm:$0xf]
        %v1649 = vld [vmem:[%s602 + $0xc] sm:$0xf]
        %v1650 = vld [vmem:[%s602 + $0x10] sm:$0xf]
        %v1651 = vld [vmem:[%s602 + $0x14] sm:$0xf]
        %v1652 = vld [vmem:[%s602 + $0x18] sm:$0xf]
        %v1653 = vld [vmem:[%s602 + $0x1c] sm:$0xf]
        %v1654 = vld [vmem:[%s605] sm:$0x1]
        %v1656 = vlaneseq
        %v1657 = vshrl.u32 %v1656, 7
        %v1658 = vsub.s32 0, %v1657
        %v1659 = vrot.slane %v1654, %v1658
        %v1669 = vunpack.c.l.b16 %v1646
        %v1670 = vunpack.c.l.b16 %v1647
        %v1671 = vunpack.c.l.b16 %v1648
        %v1672 = vunpack.c.l.b16 %v1649
        %v1673 = vunpack.c.l.b16 %v1650
        %v1674 = vunpack.c.l.b16 %v1651
        %v1675 = vunpack.c.l.b16 %v1652
        %v1676 = vunpack.c.l.b16 %v1653
        %v1677 = vpack.c.b16 %v1670, %v1669
        %v1678 = vpack.c.b16 %v1672, %v1671
        %v1679 = vpack.c.b16 %v1674, %v1673
        %v1680 = vpack.c.b16 %v1676, %v1675
        %vm1685 = vcmask 523264
        %v1687 = vsel %vm1685, %v1645, 0
        %1689 = vmatprep.subr.bf16.mxu0 0
        %1690 = vmatpush1.bf16.msra.mxu0 %v1677
        %1691 = vmatprep.subr.bf16.mxu0 0
        %1692 = vmatpush1.bf16.msra.mxu0 %v1678
        %1693 = vmatprep.subr.bf16.mxu0 0
        %1694 = vmatpush1.bf16.msra.mxu0 %v1679
        %1695 = vmatprep.subr.bf16.mxu0 0
        %1696 = vmatpush1.bf16.msra.mxu0 %v1680
        %1697 = vmatprep.subr.bf16.mxu0 0
        %1698 = vmatpush1.bf16.msra.mxu0 0
        %1699 = vmatprep.subr.bf16.mxu0 0
        %1700 = vmatpush1.bf16.msra.mxu0 0
        %1701 = vmatprep.subr.bf16.mxu0 0
        %1702 = vmatpush1.bf16.msra.mxu0 0
        %1703 = vmatprep.subr.bf16.mxu0 0
        %1704 = vmatpush1.bf16.msra.mxu0 0
        %1705 = vmatprep.subr.bf16.mxu0 0
        %1706 = vmatpush1.bf16.msra.mxu0 0
        %1707 = vmatprep.subr.bf16.mxu0 0
        %1708 = vmatpush1.bf16.msra.mxu0 0
        %1709 = vmatprep.subr.bf16.mxu0 0
        %1710 = vmatpush1.bf16.msra.mxu0 0
        %1711 = vmatprep.subr.bf16.mxu0 0
        %1712 = vmatpush1.bf16.msra.mxu0 0
        %1713 = vmatprep.subr.bf16.mxu0 0
        %1714 = vmatpush1.bf16.msra.mxu0 0
        %1715 = vmatprep.subr.bf16.mxu0 0
        %1716 = vmatpush1.bf16.msra.mxu0 0
        %1717 = vmatprep.subr.bf16.mxu0 0
        %1718 = vmatpush1.bf16.msra.mxu0 0
        %1719 = vmatprep.subr.bf16.mxu0 0
        %1720 = vmatpush1.bf16.msra.mxu0 0
        %1721 = vmatprep.mubr.bf16.mxu0 0
        %1722 = vmatmul.mubr.bf16.gmra.mrb[0].mxu0 %v1687
        %v1723 = vpop.f32.mrb[0].mxu0
        %v1724 = vadd.f32 %v1659, %v1723
        %v1725 = vpop.f32.mrb[0].mxu0
        %v1726 = vpop.f32.mrb[0].mxu0
        %v1727 = vpop.f32.mrb[0].mxu0
        %1728 = vdwg.mxu0
        %v1729 = vadd.f32 %v1546, %v1724
        %1730 = vst.msk [vmem:[#allocation2] sm:$0x1f] %vm788, %v1729
        %p1731 = scmp.eq.s32.totalorder %s32, 1
        // Predicated region
        $region77: #{clip_vision_forward.1} parent=71 // pred_check
          %p1732 = pneg %p1731
        $region78: #{clip_vision_forward.1} parent=71 // pred_check_branch
          %1734 = sbr.rel (%p1732) target = $region80
        $region79: #{clip_vision_forward.1} parent=71 // pred_region
          %vm1735 = vcmask 253952
          %v1736 = vsel %vm1735, %v1729, 0.0
          %1737 = vadd.xlane.f32.xlu0 %v1736
          %v1738 = vpop.xlane.xlu0 %1737
          %v1739 = vmul.f32 %v1738, %v792
          %v1740 = vsub.f32 %v1729, %v1739
          %v1741 = vmul.f32 %v1740, %v1740
          %v1742 = vsel %vm1735, %v1741, 0.0
          %1743 = vadd.xlane.f32.xlu0 %v1742
          %v1744 = vpop.xlane.xlu0 %1743
          %v1745 = vmul.f32 %v1744, %v792
          %v1746 = vadd.f32 %v1745, 1e-05
          %v1747 = vrsqrt.pop %v1746
          %v1748 = vmul.f32 %v1740, %v1747
          %v1750 = vrot.slane %v607, 2
          %v1752 = vmul.f32 %v1748, %v1750
          %v1753 = vrot.slane %v607, 3
          %v1755 = vadd.f32 %v1752, %v1753
          %1756 = vst.msk [vmem:[%s563] sm:$0x1] %vm1735, %v1755
        $region80: #{clip_vision_forward.1} parent=71 // pred_fallthru
          _
        %s1757 = sand.u32 %s370, 1
        %s1758 = scalar_lea.sflag [#allocation4], %s1757
        %s1759 = sand.u32 %s370, 1
        %s1760 = scalar_lea.vmem [#allocation3], %s1759
        // Predicated region
        $region81: #{clip_vision_forward.1} parent=71 // pred_check
          %p1761 = pneg %p380
        $region82: #{clip_vision_forward.1} parent=71 // pred_check_branch
          %1763 = sbr.rel (%p1761) target = $region84
        $region83: #{clip_vision_forward.1} parent=71 // pred_region
          %s1765 = ssub.s32 16, 16
          %1766 = vsyncadd %s1758, %s1765
          %s1767 = smul.addr %s31, 16
          %s1768 = scalar_lea.hbm %s13, %s1767
          %s1770 = sshll.u32 %s1760, 4
          %s1771 = int_to_ptr.vmem [resolvable:$true] %s1770
          %1773 = dma.vmem_to_hbm [thread:$0]  %s1771, 16, %s1768, %s1758
        $region84: #{clip_vision_forward.1} parent=71 // pred_fallthru
          _
      $region72: #{clip_vision_forward.1} parent=5 // pred_fallthru
        _
      %p1774 = scmp.le.s32.totalorder 2, %s22
      // Predicated region
      $region85: #{clip_vision_forward.1} parent=5 // pred_check
        %p1775 = pneg %p1774
      $region86: #{clip_vision_forward.1} parent=5 // pred_check_branch
        %1777 = sbr.rel (%p1775) target = $region88
      $region87: #{clip_vision_forward.1} parent=5 // pred_region
        %s1778 = ssub.s32 %s22, 2
        // Predicated region
        $region89: #{clip_vision_forward.1} parent=87 // pred_check
          %p1779 = pneg %p386
        $region90: #{clip_vision_forward.1} parent=87 // pred_check_branch
          %1781 = sbr.rel (%p1779) target = $region92
        $region91: #{clip_vision_forward.1} parent=87 // pred_region
          %s1782 = sand.u32 %s371, 1
          %s1783 = scalar_lea.sflag [#allocation4], %s1782
          %s1784 = sand.u32 %s371, 1
          %s1785 = scalar_lea.vmem [#allocation3], %s1784
          %1786 = dma.done %s1783, 16
        $region92: #{clip_vision_forward.1} parent=87 // pred_fallthru
          _
      $region88: #{clip_vision_forward.1} parent=5 // pred_fallthru
        _
    $region6: #{clip_vision_forward.1} parent=1 // loop_footer
      %s26 = sadd.s32 1, %s22
    $region7: #{clip_vision_forward.1} parent=1 // loop_footer_branch
      %21 = sbr.rel target = $region3
    $region8: #{clip_vision_forward.1} parent=1 // loop_exit
      _
    %1787 = vsyncpa [#allocation4], 1
    %s1788 = scalar_lea.sflag [#allocation4], 1
    %1789 = vsyncpa %s1788, 1

</llo_original>
